<compile_context>
chip_gen: v6e
topology: v6e:2x2x1
jax: 0.10.0
libtpu: 0.0.40
codegen_flags: <defaults>
</compile_context>

<pallas_src>
import functools

import jax
import jax.numpy as jnp
from jax.experimental import pallas as pl
from jax.experimental.pallas import tpu as pltpu


def _sigmoid(x):
    # sigmoid(x) = 0.5 * (tanh(x/2) + 1): a single EUP op per element instead
    # of exp + divide (two EUP pushes).  Matters on v7x where the single EUP
    # slot becomes the binding resource; harmless on v5e/v6e.
    return jnp.tanh(x * 0.5) * 0.5 + 0.5


def _dot_nt(a, b):
    """a: (m, k), b: (n, k) -> (m, n) f32; contraction over the last dims (no .T)."""
    return jax.lax.dot_general(
        a,
        b,
        dimension_numbers=(((1,), (1,)), ((), ())),
        preferred_element_type=jnp.float32,
    )


@functools.lru_cache(maxsize=1)
def _num_tensorcores() -> int:
    """Best-effort TensorCore count (2 on v7x, 1 on v5e/v6e); defaults to 1."""
    try:
        info = pltpu.get_tpu_info()
    except Exception:
        return 1
    for attr in ("num_cores", "core_count", "num_tensorcores", "tensorcore_count"):
        v = getattr(info, attr, None)
        if isinstance(v, int) and v > 0:
            return v
    return 1


def _pick_tile(n, want, align):
    """Largest multiple of `align` <= min(want, n) that divides n; else full n."""
    t = min(want, n)
    t -= t % align
    while t >= align:
        if n % t == 0:
            return t
        t -= align
    return n  # full extent is always a legal block dim


# ---------------------------------------------------------------------------
# Kernels
# ---------------------------------------------------------------------------


def _fused_resident_kernel(tn, zr_ref, zc_ref, adj_ref):
    """Fast path, resident column operand: adj_tile = sigmoid(zr @ zc[j].T)."""
    col0 = pl.multiple_of(pl.program_id(1) * tn, tn)
    zc = zc_ref[pl.ds(col0, tn), :]  # sliced on-chip; zc DMA'd from HBM once
    adj_ref[...] = _sigmoid(_dot_nt(zr_ref[...], zc)).astype(adj_ref.dtype)


def _fused_kernel(zr_ref, zc_ref, adj_ref):
    """Fast path, streamed column operand (zc too big to keep resident)."""
    adj_ref[...] = _sigmoid(_dot_nt(zr_ref[...], zc_ref[...])).astype(adj_ref.dtype)


def _ksplit_inplace_kernel(zr_ref, zc_ref, adj_ref):
    """Large-D path, f32 output: accumulate straight into the output block."""
    k = pl.program_id(2)

    @pl.when(k == 0)
    def _():
        adj_ref[...] = jnp.zeros_like(adj_ref)

    adj_ref[...] += _dot_nt(zr_ref[...], zc_ref[...])

    @pl.when(k == pl.num_programs(2) - 1)
    def _():
        adj_ref[...] = _sigmoid(adj_ref[...])


def _ksplit_scratch_kernel(zr_ref, zc_ref, adj_ref, acc_ref):
    """Large-D path, narrow output dtype: accumulate in f32 scratch, cast once."""
    k = pl.program_id(2)

    @pl.when(k == 0)
    def _():
        acc_ref[...] = jnp.zeros_like(acc_ref)

    acc_ref[...] += _dot_nt(zr_ref[...], zc_ref[...])

    @pl.when(k == pl.num_programs(2) - 1)
    def _():
        adj_ref[...] = _sigmoid(acc_ref[...]).astype(adj_ref.dtype)


# ---------------------------------------------------------------------------
# Wrapper
# ---------------------------------------------------------------------------


@functools.partial(
    jax.jit,
    static_argnames=(
        "tm", "tn", "max_tk", "out_dtype", "mxu_dtype", "resident_budget_bytes"
    ),
)
def inner_product_decoder(
    z,
    *,
    tm=512,
    tn=512,
    max_tk=512,
    out_dtype=None,
    mxu_dtype=jnp.bfloat16,
    resident_budget_bytes=8 * 1024 * 1024,
):
    """adj = sigmoid(z @ z.T), z: (N, D).  Dropout is identity (eval mode).

    Pass out_dtype=jnp.bfloat16 to halve the dominant NxN HBM writeback when
    bf16 probabilities are acceptable (recommended for large N).  mxu_dtype
    only affects the large-D (k-split, MXU-bound) path.
    """
    N, D = z.shape
    out_dtype = z.dtype if out_dtype is None else jnp.dtype(out_dtype)
    out_bytes = jnp.dtype(out_dtype).itemsize
    in_bytes = z.dtype.itemsize

    tm = _pick_tile(N, tm, 8)
    tn = _pick_tile(N, tn, 128)

    # Megacore: on 2-TC chips keep >= 2 row tiles so both cores get work along
    # the "parallel" i axis.  Gated on the detected core count so single-TC
    # chips don't pay extra grid-step overhead for nothing.
    if _num_tensorcores() >= 2 and N // tm < 2:
        half = _pick_tile(N, max(tm // 2, 8), 8)
        if half < N and N // half >= 2:
            tm = half

    if D <= max_tk:
        # Fast path: whole feature dim in one MXU pass; no reduction axis, no
        # scratch, sigmoid fused into the single lane-dense output store.
        grid = (N // tm, N // tn)
        # Keep the column operand resident (fetched once) when it fits a
        # modest VMEM budget (x2 for the pipeline's buffering).
        resident = 2 * N * D * in_bytes <= resident_budget_bytes
        if resident:
            kernel = functools.partial(_fused_resident_kernel, tn)
            zc_spec = pl.BlockSpec((N, D), lambda i, j: (0, 0))
            read_bytes = 2 * N * D * in_bytes
        else:
            kernel = _fused_kernel
            zc_spec = pl.BlockSpec((tn, D), lambda i, j: (j, 0))
            read_bytes = N * D * in_bytes * (1 + N // tm)
        cost = pl.CostEstimate(
            flops=2 * N * N * D,
            transcendentals=N * N,
            bytes_accessed=N * N * out_bytes + read_bytes,
        )
        return pl.pallas_call(
            kernel,
            out_shape=jax.ShapeDtypeStruct((N, N), out_dtype),
            grid_spec=pltpu.PrefetchScalarGridSpec(
                num_scalar_prefetch=0,
                grid=grid,
                in_specs=[
                    pl.BlockSpec((tm, D), lambda i, j: (i, 0)),  # row tile of z
                    zc_spec,                                      # column operand
                ],
                out_specs=pl.BlockSpec((tm, tn), lambda i, j: (i, j)),
            ),
            compiler_params=pltpu.CompilerParams(
                dimension_semantics=("parallel", "parallel")
            ),
            cost_estimate=cost,
        )(z, z)

    # ------------------------------------------------------------------
    # General path (large D): split the feature dim and accumulate in f32.
    # This regime is MXU-bound -> feed the MXU bf16 operands (f32 runs at a
    # small fraction of the bf16 rate on every generation); acc stays f32.
    # ------------------------------------------------------------------
    zk = z if mxu_dtype is None else z.astype(mxu_dtype)
    in_k_bytes = zk.dtype.itemsize
    tk = _pick_tile(D, max_tk, 128)
    grid = (N // tm, N // tn, D // tk)

    inplace = jnp.dtype(out_dtype) == jnp.dtype(jnp.float32)
    kernel = _ksplit_inplace_kernel if inplace else _ksplit_scratch_kernel
    scratch = [] if inplace else [pltpu.VMEM((tm, tn), jnp.float32)]

    cost = pl.CostEstimate(
        flops=2 * N * N * D,
        transcendentals=N * N,
        bytes_accessed=(
            N * N * out_bytes + N * D * in_k_bytes * ((N // tn) + (N // tm))
        ),
    )
    return pl.pallas_call(
        kernel,
        out_shape=jax.ShapeDtypeStruct((N, N), out_dtype),
        grid_spec=pltpu.PrefetchScalarGridSpec(
            num_scalar_prefetch=0,
            grid=grid,
            in_specs=[
                pl.BlockSpec((tm, tk), lambda i, j, k: (i, k)),
                pl.BlockSpec((tn, tk), lambda i, j, k: (j, k)),
            ],
            out_specs=pl.BlockSpec((tm, tn), lambda i, j, k: (i, j)),
            scratch_shapes=scratch,
        ),
        compiler_params=pltpu.CompilerParams(
            dimension_semantics=("parallel", "parallel", "arbitrary")
        ),
        cost_estimate=cost,
    )(zk, zk)


def _reference(z):
    return jax.nn.sigmoid(z @ z.T)


if __name__ == "__main__":
    key = jax.random.PRNGKey(0)

    # Small GAE-style latent matrix: N nodes x D latent dims.
    N, D = 512, 128
    z = jax.random.normal(key, (N, D), dtype=jnp.float32)
    ref = _reference(z)

    # Fast path, output dtype preserved (matches the PyTorch module exactly).
    adj = jax.block_until_ready(inner_product_decoder(z))
    assert adj.shape == (N, N)
    assert adj.dtype == z.dtype
    assert jnp.allclose(adj, ref, atol=1e-5, rtol=1e-5), "mismatch (fast path)"

    # bf16 adjacency output: halves the dominant NxN HBM writeback.
    adj_bf16 = jax.block_until_ready(inner_product_decoder(z, out_dtype=jnp.bfloat16))
    assert adj_bf16.dtype == jnp.bfloat16
    assert jnp.allclose(adj_bf16.astype(jnp.float32), ref, atol=1e-2), (
        "mismatch (bf16 output)"
    )

    # k-split (large-D) path with exact f32 MXU operands: verifies path logic.
    z2 = jax.random.normal(jax.random.PRNGKey(1), (256, 256), dtype=jnp.float32)
    ref2 = _reference(z2)
    adj2 = jax.block_until_ready(
        inner_product_decoder(z2, max_tk=128, mxu_dtype=jnp.float32)
    )
    assert jnp.allclose(adj2, ref2, atol=1e-4, rtol=1e-4), "mismatch (k-split f32)"

    # k-split path with the default bf16 MXU operands (f32 accumulation):
    # compare against a bf16-input reference (expected precision change).
    zb = z2.astype(jnp.bfloat16)
    ref2_bf16 = jax.nn.sigmoid(
        jax.lax.dot_general(
            zb, zb, (((1,), (1,)), ((), ())), preferred_element_type=jnp.float32
        )
    )
    adj3 = jax.block_until_ready(inner_product_decoder(z2, max_tk=128))
    assert jnp.allclose(adj3, ref2_bf16, atol=2e-3, rtol=2e-3), "mismatch (k-split bf16)"

    print("KERNEL_OK")
</pallas_src>

<mosaic_0001>
module attributes {stable_mosaic.version = 11 : i64} {
  func.func @_fused_resident_kernel(%arg0: i32, %arg1: i32, %arg2: memref<512x128xf32, #tpu.memory_space<vmem>>, %arg3: memref<512x128xf32, #tpu.memory_space<vmem>>, %arg4: memref<512x512xf32, #tpu.memory_space<vmem>>) attributes {dimension_semantics = [#tpu.dimension_semantics<parallel>, #tpu.dimension_semantics<parallel>], iteration_bounds = array<i64: 1, 1>, scalar_prefetch = 0 : i64, scratch_operands = 0 : i64, tpu.core_type = #tpu.core_type<tc>, window_params = [{transform_indices = @transform_0, window_bounds = array<i64: 512, 128>}, {pipeline_mode = #tpu.pipeline_mode<synchronous>, transform_indices = @transform_1, window_bounds = array<i64: 512, 128>}, {transform_indices = @transform_2, window_bounds = array<i64: 512, 512>}]} {
    %c512_i32 = arith.constant 512 : i32
    %0 = arith.muli %arg1, %c512_i32 : i32
    %1 = tpu.assume_multiple %0, 512 : i32
    %2 = arith.index_cast %1 : i32 to index
    %c0 = arith.constant 0 : index
    %3 = vector.load %arg3[%2, %c0] : memref<512x128xf32, #tpu.memory_space<vmem>>, vector<512x128xf32>
    %c0_0 = arith.constant 0 : index
    %c0_1 = arith.constant 0 : index
    %4 = vector.load %arg2[%c0_0, %c0_1] : memref<512x128xf32, #tpu.memory_space<vmem>>, vector<512x128xf32>
    %cst = arith.constant dense<0.000000e+00> : vector<512x512xf32>
    %5 = tpu.matmul %4, %3, %cst {dimension_numbers = #tpu.dot_dimension_numbers<[1], [1], [0], [0], [0, 0, 1, 0], [], []>} : vector<512x128xf32>, vector<512x128xf32>, vector<512x512xf32> -> vector<512x512xf32>
    %cst_2 = arith.constant 5.000000e-01 : f32
    %6 = vector.broadcast %cst_2 : f32 to vector<512x512xf32>
    %7 = arith.mulf %5, %6 : vector<512x512xf32>
    %8 = math.tanh %7 : vector<512x512xf32>
    %cst_3 = arith.constant 5.000000e-01 : f32
    %9 = vector.broadcast %cst_3 : f32 to vector<512x512xf32>
    %10 = arith.mulf %8, %9 : vector<512x512xf32>
    %cst_4 = arith.constant 5.000000e-01 : f32
    %11 = vector.broadcast %cst_4 : f32 to vector<512x512xf32>
    %12 = arith.addf %10, %11 : vector<512x512xf32>
    %c0_5 = arith.constant 0 : index
    %c0_6 = arith.constant 0 : index
    %13 = vector.load %arg4[%c0_5, %c0_6] : memref<512x512xf32, #tpu.memory_space<vmem>>, vector<512x512xf32>
    tpu.vector_store %arg4[%c0_5, %c0_6], %12 {strides = array<i32>} : memref<512x512xf32, #tpu.memory_space<vmem>>, vector<512x512xf32>,
    return
  }
  func.func @transform_0(%arg0: i32, %arg1: i32) -> (i32, i32) {
    %c0_i32 = arith.constant 0 : i32
    %c0_i32_0 = arith.constant 0 : i32
    return %arg0, %c0_i32 : i32, i32
  }
  func.func @transform_1(%arg0: i32, %arg1: i32) -> (i32, i32) {
    %c0_i32 = arith.constant 0 : i32
    %c0_i32_0 = arith.constant 0 : i32
    %c0_i32_1 = arith.constant 0 : i32
    return %c0_i32, %c0_i32_0 : i32, i32
  }
  func.func @transform_2(%arg0: i32, %arg1: i32) -> (i32, i32) {
    %c0_i32 = arith.constant 0 : i32
    return %arg0, %arg1 : i32, i32
  }
}

</mosaic_0001>

<llo_original>
// kernel: inner_product_decoder.1
$region0: #{inner_product_decoder.1}
  #allocation0 [shape = 'u32[]', space=smem, size = 0x4, offset = 0x4, fixed_abs, tag = 'smem constant byte address 0x4 - core index']
  #allocation1 [shape = 'u32[144,128]{1,0:T(1,128)}', space=vmem, size = 0x12000, scoped, tag = 'internal scratch']
  %s0 = inlined_call_operand.hbm [shape: f32[512,128], index: 0, kind: input, shape index: {}, may-alias: {0,1}]
  %s1 = inlined_call_operand.hbm [shape: f32[512,128], index: 1, kind: input, shape index: {}, may-alias: {0,1}]
  %s2 = inlined_call_operand.hbm [shape: f32[512,512], index: 2, kind: output, shape index: {}]
  %s3 = sld [smem:[#allocation0]]
  $region26: #{inner_product_decoder.1} parent=0
    _
  %s5 = ssub.s32 1, %s3
  %s6 = scalar_select 0, %s5, %s3
  $region1: #{inner_product_decoder.1} parent=0
    #allocation2 [shape = 'u8[262144]{0}', space=vmem, size = 0x40000, scoped, tag = 'input window, operand 0, single buffered']
    #allocation3 [shape = 's32[1]{0}', space=sflag, size = 0x4, scoped, tag = 'scoped memory for inner_product_decoder.1']
    #allocation4 [shape = 's32[1]{0}', space=sflag, size = 0x4, scoped, tag = 'scoped memory for inner_product_decoder.1']
    #allocation5 [shape = 'u8[262144]{0}', space=vmem, size = 0x40000, scoped, tag = 'input window, operand 1, single buffered']
    #allocation6 [shape = 's32[1]{0}', space=sflag, size = 0x4, scoped, tag = 'scoped memory for inner_product_decoder.1']
    #allocation7 [shape = 'u8[1048576]{0}', space=vmem, size = 0x100000, scoped, tag = 'output window, operand 0, single buffered']
    %7 = vsyncpa [#allocation3], 0
    %8 = vsyncpa [#allocation6], 0
    %9 = vsyncpa [#allocation4], 0
    // Predicated region
    $region2: #{inner_product_decoder.1} parent=1 // pred_check
      _
    $region3: #{inner_product_decoder.1} parent=1 // pred_check_branch
      %11 = sbr.rel (0) target = $region5
    $region4: #{inner_product_decoder.1} parent=1 // pred_region
      %s13 = ssub.s32 8192, 8192
      %14 = vsyncadd [#allocation3], %s13
      %s15 = sshll.u32 [#allocation2], 4
      %s16 = int_to_ptr.vmem [resolvable:$true] %s15
      %21 = dma.hbm_to_vmem [thread:$0]  %s0, 8192, %s16, [#allocation3], 128, 128, 8
    $region5: #{inner_product_decoder.1} parent=1 // pred_fallthru
      _
    // Predicated region
    $region6: #{inner_product_decoder.1} parent=1 // pred_check
      _
    $region7: #{inner_product_decoder.1} parent=1 // pred_check_branch
      %23 = sbr.rel (0) target = $region9
    $region8: #{inner_product_decoder.1} parent=1 // pred_region
      %s25 = ssub.s32 8192, 8192
      %26 = vsyncadd [#allocation6], %s25
      %s27 = sshll.u32 [#allocation5], 4
      %s28 = int_to_ptr.vmem [resolvable:$true] %s27
      %33 = dma.hbm_to_vmem [thread:$0]  %s1, 8192, %s28, [#allocation6], 128, 128, 8
    $region9: #{inner_product_decoder.1} parent=1 // pred_fallthru
      _
    // Predicated region
    $region10: #{inner_product_decoder.1} parent=1 // pred_check
      _
    $region11: #{inner_product_decoder.1} parent=1 // pred_check_branch
      %35 = sbr.rel (0) target = $region13
    $region12: #{inner_product_decoder.1} parent=1 // pred_region
      %36 = dma.done [#allocation3], 8192
    $region13: #{inner_product_decoder.1} parent=1 // pred_fallthru
      _
    // Predicated region
    $region14: #{inner_product_decoder.1} parent=1 // pred_check
      _
    $region15: #{inner_product_decoder.1} parent=1 // pred_check_branch
      %38 = sbr.rel (0) target = $region17
    $region16: #{inner_product_decoder.1} parent=1 // pred_region
      %39 = dma.done [#allocation6], 8192
    $region17: #{inner_product_decoder.1} parent=1 // pred_fallthru
      _
    %s40 = smul.u32 0, 512
    %s41 = scalar_lea.vmem [#allocation5], %s40
    %v42 = vld [vmem:[%s41] sm:$0xff]
    %v43 = vld [vmem:[%s41 + $0x8] sm:$0xff]
    %v44 = vld [vmem:[%s41 + $0x10] sm:$0xff]
    %v45 = vld [vmem:[%s41 + $0x18] sm:$0xff]
    %v46 = vld [vmem:[%s41 + $0x20] sm:$0xff]
    %v47 = vld [vmem:[%s41 + $0x28] sm:$0xff]
    %v48 = vld [vmem:[%s41 + $0x30] sm:$0xff]
    %v49 = vld [vmem:[%s41 + $0x38] sm:$0xff]
    %v50 = vld [vmem:[%s41 + $0x40] sm:$0xff]
    %v51 = vld [vmem:[%s41 + $0x48] sm:$0xff]
    %v52 = vld [vmem:[%s41 + $0x50] sm:$0xff]
    %v53 = vld [vmem:[%s41 + $0x58] sm:$0xff]
    %v54 = vld [vmem:[%s41 + $0x60] sm:$0xff]
    %v55 = vld [vmem:[%s41 + $0x68] sm:$0xff]
    %v56 = vld [vmem:[%s41 + $0x70] sm:$0xff]
    %v57 = vld [vmem:[%s41 + $0x78] sm:$0xff]
    %v58 = vld [vmem:[%s41 + $0x80] sm:$0xff]
    %v59 = vld [vmem:[%s41 + $0x88] sm:$0xff]
    %v60 = vld [vmem:[%s41 + $0x90] sm:$0xff]
    %v61 = vld [vmem:[%s41 + $0x98] sm:$0xff]
    %v62 = vld [vmem:[%s41 + $0xa0] sm:$0xff]
    %v63 = vld [vmem:[%s41 + $0xa8] sm:$0xff]
    %v64 = vld [vmem:[%s41 + $0xb0] sm:$0xff]
    %v65 = vld [vmem:[%s41 + $0xb8] sm:$0xff]
    %v66 = vld [vmem:[%s41 + $0xc0] sm:$0xff]
    %v67 = vld [vmem:[%s41 + $0xc8] sm:$0xff]
    %v68 = vld [vmem:[%s41 + $0xd0] sm:$0xff]
    %v69 = vld [vmem:[%s41 + $0xd8] sm:$0xff]
    %v70 = vld [vmem:[%s41 + $0xe0] sm:$0xff]
    %v71 = vld [vmem:[%s41 + $0xe8] sm:$0xff]
    %v72 = vld [vmem:[%s41 + $0xf0] sm:$0xff]
    %v73 = vld [vmem:[%s41 + $0xf8] sm:$0xff]
    %v74 = vld [vmem:[%s41 + $0x100] sm:$0xff]
    %v75 = vld [vmem:[%s41 + $0x108] sm:$0xff]
    %v76 = vld [vmem:[%s41 + $0x110] sm:$0xff]
    %v77 = vld [vmem:[%s41 + $0x118] sm:$0xff]
    %v78 = vld [vmem:[%s41 + $0x120] sm:$0xff]
    %v79 = vld [vmem:[%s41 + $0x128] sm:$0xff]
    %v80 = vld [vmem:[%s41 + $0x130] sm:$0xff]
    %v81 = vld [vmem:[%s41 + $0x138] sm:$0xff]
    %v82 = vld [vmem:[%s41 + $0x140] sm:$0xff]
    %v83 = vld [vmem:[%s41 + $0x148] sm:$0xff]
    %v84 = vld [vmem:[%s41 + $0x150] sm:$0xff]
    %v85 = vld [vmem:[%s41 + $0x158] sm:$0xff]
    %v86 = vld [vmem:[%s41 + $0x160] sm:$0xff]
    %v87 = vld [vmem:[%s41 + $0x168] sm:$0xff]
    %v88 = vld [vmem:[%s41 + $0x170] sm:$0xff]
    %v89 = vld [vmem:[%s41 + $0x178] sm:$0xff]
    %v90 = vld [vmem:[%s41 + $0x180] sm:$0xff]
    %v91 = vld [vmem:[%s41 + $0x188] sm:$0xff]
    %v92 = vld [vmem:[%s41 + $0x190] sm:$0xff]
    %v93 = vld [vmem:[%s41 + $0x198] sm:$0xff]
    %v94 = vld [vmem:[%s41 + $0x1a0] sm:$0xff]
    %v95 = vld [vmem:[%s41 + $0x1a8] sm:$0xff]
    %v96 = vld [vmem:[%s41 + $0x1b0] sm:$0xff]
    %v97 = vld [vmem:[%s41 + $0x1b8] sm:$0xff]
    %v98 = vld [vmem:[%s41 + $0x1c0] sm:$0xff]
    %v99 = vld [vmem:[%s41 + $0x1c8] sm:$0xff]
    %v100 = vld [vmem:[%s41 + $0x1d0] sm:$0xff]
    %v101 = vld [vmem:[%s41 + $0x1d8] sm:$0xff]
    %v102 = vld [vmem:[%s41 + $0x1e0] sm:$0xff]
    %v103 = vld [vmem:[%s41 + $0x1e8] sm:$0xff]
    %v104 = vld [vmem:[%s41 + $0x1f0] sm:$0xff]
    %v105 = vld [vmem:[%s41 + $0x1f8] sm:$0xff]
    %v106 = vld [vmem:[#allocation2] sm:$0xff]
    %v107 = vld [vmem:[#allocation2 + $0x8] sm:$0xff]
    %v108 = vld [vmem:[#allocation2 + $0x10] sm:$0xff]
    %v109 = vld [vmem:[#allocation2 + $0x18] sm:$0xff]
    %v110 = vld [vmem:[#allocation2 + $0x20] sm:$0xff]
    %v111 = vld [vmem:[#allocation2 + $0x28] sm:$0xff]
    %v112 = vld [vmem:[#allocation2 + $0x30] sm:$0xff]
    %v113 = vld [vmem:[#allocation2 + $0x38] sm:$0xff]
    %v114 = vld [vmem:[#allocation2 + $0x40] sm:$0xff]
    %v115 = vld [vmem:[#allocation2 + $0x48] sm:$0xff]
    %v116 = vld [vmem:[#allocation2 + $0x50] sm:$0xff]
    %v117 = vld [vmem:[#allocation2 + $0x58] sm:$0xff]
    %v118 = vld [vmem:[#allocation2 + $0x60] sm:$0xff]
    %v119 = vld [vmem:[#allocation2 + $0x68] sm:$0xff]
    %v120 = vld [vmem:[#allocation2 + $0x70] sm:$0xff]
    %v121 = vld [vmem:[#allocation2 + $0x78] sm:$0xff]
    %v122 = vld [vmem:[#allocation2 + $0x80] sm:$0xff]
    %v123 = vld [vmem:[#allocation2 + $0x88] sm:$0xff]
    %v124 = vld [vmem:[#allocation2 + $0x90] sm:$0xff]
    %v125 = vld [vmem:[#allocation2 + $0x98] sm:$0xff]
    %v126 = vld [vmem:[#allocation2 + $0xa0] sm:$0xff]
    %v127 = vld [vmem:[#allocation2 + $0xa8] sm:$0xff]
    %v128 = vld [vmem:[#allocation2 + $0xb0] sm:$0xff]
    %v129 = vld [vmem:[#allocation2 + $0xb8] sm:$0xff]
    %v130 = vld [vmem:[#allocation2 + $0xc0] sm:$0xff]
    %v131 = vld [vmem:[#allocation2 + $0xc8] sm:$0xff]
    %v132 = vld [vmem:[#allocation2 + $0xd0] sm:$0xff]
    %v133 = vld [vmem:[#allocation2 + $0xd8] sm:$0xff]
    %v134 = vld [vmem:[#allocation2 + $0xe0] sm:$0xff]
    %v135 = vld [vmem:[#allocation2 + $0xe8] sm:$0xff]
    %v136 = vld [vmem:[#allocation2 + $0xf0] sm:$0xff]
    %v137 = vld [vmem:[#allocation2 + $0xf8] sm:$0xff]
    %v138 = vld [vmem:[#allocation2 + $0x100] sm:$0xff]
    %v139 = vld [vmem:[#allocation2 + $0x108] sm:$0xff]
    %v140 = vld [vmem:[#allocation2 + $0x110] sm:$0xff]
    %v141 = vld [vmem:[#allocation2 + $0x118] sm:$0xff]
    %v142 = vld [vmem:[#allocation2 + $0x120] sm:$0xff]
    %v143 = vld [vmem:[#allocation2 + $0x128] sm:$0xff]
    %v144 = vld [vmem:[#allocation2 + $0x130] sm:$0xff]
    %v145 = vld [vmem:[#allocation2 + $0x138] sm:$0xff]
    %v146 = vld [vmem:[#allocation2 + $0x140] sm:$0xff]
    %v147 = vld [vmem:[#allocation2 + $0x148] sm:$0xff]
    %v148 = vld [vmem:[#allocation2 + $0x150] sm:$0xff]
    %v149 = vld [vmem:[#allocation2 + $0x158] sm:$0xff]
    %v150 = vld [vmem:[#allocation2 + $0x160] sm:$0xff]
    %v151 = vld [vmem:[#allocation2 + $0x168] sm:$0xff]
    %v152 = vld [vmem:[#allocation2 + $0x170] sm:$0xff]
    %v153 = vld [vmem:[#allocation2 + $0x178] sm:$0xff]
    %v154 = vld [vmem:[#allocation2 + $0x180] sm:$0xff]
    %v155 = vld [vmem:[#allocation2 + $0x188] sm:$0xff]
    %v156 = vld [vmem:[#allocation2 + $0x190] sm:$0xff]
    %v157 = vld [vmem:[#allocation2 + $0x198] sm:$0xff]
    %v158 = vld [vmem:[#allocation2 + $0x1a0] sm:$0xff]
    %v159 = vld [vmem:[#allocation2 + $0x1a8] sm:$0xff]
    %v160 = vld [vmem:[#allocation2 + $0x1b0] sm:$0xff]
    %v161 = vld [vmem:[#allocation2 + $0x1b8] sm:$0xff]
    %v162 = vld [vmem:[#allocation2 + $0x1c0] sm:$0xff]
    %v163 = vld [vmem:[#allocation2 + $0x1c8] sm:$0xff]
    %v164 = vld [vmem:[#allocation2 + $0x1d0] sm:$0xff]
    %v165 = vld [vmem:[#allocation2 + $0x1d8] sm:$0xff]
    %v166 = vld [vmem:[#allocation2 + $0x1e0] sm:$0xff]
    %v167 = vld [vmem:[#allocation2 + $0x1e8] sm:$0xff]
    %v168 = vld [vmem:[#allocation2 + $0x1f0] sm:$0xff]
    %v169 = vld [vmem:[#allocation2 + $0x1f8] sm:$0xff]
    %170 = vmatprep.subr.mxu0 0.0
    %171 = vmatpush1.xpose.msra.mxu0 %v57
    %172 = vmatprep.subr.mxu0 0.0
    %173 = vmatpush1.xpose.msra.mxu0 %v56
    %174 = vmatprep.subr.mxu0 0.0
    %175 = vmatpush1.xpose.msra.mxu0 %v55
    %176 = vmatprep.subr.mxu0 0.0
    %177 = vmatpush1.xpose.msra.mxu0 %v54
    %178 = vmatprep.subr.mxu0 0.0
    %179 = vmatpush1.xpose.msra.mxu0 %v53
    %180 = vmatprep.subr.mxu0 0.0
    %181 = vmatpush1.xpose.msra.mxu0 %v52
    %182 = vmatprep.subr.mxu0 0.0
    %183 = vmatpush1.xpose.msra.mxu0 %v51
    %184 = vmatprep.subr.mxu0 0.0
    %185 = vmatpush1.xpose.msra.mxu0 %v50
    %186 = vmatprep.subr.mxu0 0.0
    %187 = vmatpush1.xpose.msra.mxu0 %v49
    %188 = vmatprep.subr.mxu0 0.0
    %189 = vmatpush1.xpose.msra.mxu0 %v48
    %190 = vmatprep.subr.mxu0 0.0
    %191 = vmatpush1.xpose.msra.mxu0 %v47
    %192 = vmatprep.subr.mxu0 0.0
    %193 = vmatpush1.xpose.msra.mxu0 %v46
    %194 = vmatprep.subr.mxu0 0.0
    %195 = vmatpush1.xpose.msra.mxu0 %v45
    %196 = vmatprep.subr.mxu0 0.0
    %197 = vmatpush1.xpose.msra.mxu0 %v44
    %198 = vmatprep.subr.mxu0 0.0
    %199 = vmatpush1.xpose.msra.mxu0 %v43
    %200 = vmatprep.subr.mxu0 0.0
    %201 = vmatpush1.xpose.msra.mxu0 %v42
    %202 = vmatprep.subr.mxu0 0.0
    %203 = vmatpush2.xpose.msra.mxu0 %v73
    %204 = vmatprep.subr.mxu0 0.0
    %205 = vmatpush2.xpose.msra.mxu0 %v72
    %206 = vmatprep.subr.mxu0 0.0
    %207 = vmatpush2.xpose.msra.mxu0 %v71
    %208 = vmatprep.subr.mxu0 0.0
    %209 = vmatpush2.xpose.msra.mxu0 %v70
    %210 = vmatprep.subr.mxu0 0.0
    %211 = vmatpush2.xpose.msra.mxu0 %v69
    %212 = vmatprep.subr.mxu0 0.0
    %213 = vmatpush2.xpose.msra.mxu0 %v68
    %214 = vmatprep.subr.mxu0 0.0
    %215 = vmatpush2.xpose.msra.mxu0 %v67
    %216 = vmatprep.subr.mxu0 0.0
    %217 = vmatpush2.xpose.msra.mxu0 %v66
    %218 = vmatprep.subr.mxu0 0.0
    %219 = vmatpush2.xpose.msra.mxu0 %v65
    %220 = vmatprep.subr.mxu0 0.0
    %221 = vmatpush2.xpose.msra.mxu0 %v64
    %222 = vmatprep.subr.mxu0 0.0
    %223 = vmatpush2.xpose.msra.mxu0 %v63
    %224 = vmatprep.subr.mxu0 0.0
    %225 = vmatpush2.xpose.msra.mxu0 %v62
    %226 = vmatprep.subr.mxu0 0.0
    %227 = vmatpush2.xpose.msra.mxu0 %v61
    %228 = vmatprep.subr.mxu0 0.0
    %229 = vmatpush2.xpose.msra.mxu0 %v60
    %230 = vmatprep.subr.mxu0 0.0
    %231 = vmatpush2.xpose.msra.mxu0 %v59
    %232 = vmatprep.subr.mxu0 0.0
    %233 = vmatpush2.xpose.msra.mxu0 %v58
    %234 = vmatprep.mubr.f32.mxu0 0.0
    %235 = vmatmul.mubr.f32.gmra.mxu0 %v106
    %v236 = vpop.f32.mrf.mxu0
    %v237 = vadd.f32 0.0, %v236
    %v238 = vpop.f32.mrf.mxu0
    %v239 = vadd.f32 0.0, %v238
    %240 = vmatprep.mubr.f32.mxu0 0.0
    %241 = vmatmul.mubr.f32.gmra.mxu0 %v107
    %v242 = vpop.f32.mrf.mxu0
    %v243 = vadd.f32 0.0, %v242
    %v244 = vpop.f32.mrf.mxu0
    %v245 = vadd.f32 0.0, %v244
    %246 = vmatprep.mubr.f32.mxu0 0.0
    %247 = vmatmul.mubr.f32.gmra.mxu0 %v108
    %v248 = vpop.f32.mrf.mxu0
    %v249 = vadd.f32 0.0, %v248
    %v250 = vpop.f32.mrf.mxu0
    %v251 = vadd.f32 0.0, %v250
    %252 = vmatprep.mubr.f32.mxu0 0.0
    %253 = vmatmul.mubr.f32.gmra.mxu0 %v109
    %v254 = vpop.f32.mrf.mxu0
    %v255 = vadd.f32 0.0, %v254
    %v256 = vpop.f32.mrf.mxu0
    %v257 = vadd.f32 0.0, %v256
    %258 = vmatprep.mubr.f32.mxu0 0.0
    %259 = vmatmul.mubr.f32.gmra.mxu0 %v110
    %v260 = vpop.f32.mrf.mxu0
    %v261 = vadd.f32 0.0, %v260
    %v262 = vpop.f32.mrf.mxu0
    %v263 = vadd.f32 0.0, %v262
    %264 = vmatprep.mubr.f32.mxu0 0.0
    %265 = vmatmul.mubr.f32.gmra.mxu0 %v111
    %v266 = vpop.f32.mrf.mxu0
    %v267 = vadd.f32 0.0, %v266
    %v268 = vpop.f32.mrf.mxu0
    %v269 = vadd.f32 0.0, %v268
    %270 = vmatprep.mubr.f32.mxu0 0.0
    %271 = vmatmul.mubr.f32.gmra.mxu0 %v112
    %v272 = vpop.f32.mrf.mxu0
    %v273 = vadd.f32 0.0, %v272
    %v274 = vpop.f32.mrf.mxu0
    %v275 = vadd.f32 0.0, %v274
    %276 = vmatprep.mubr.f32.mxu0 0.0
    %277 = vmatmul.mubr.f32.gmra.mxu0 %v113
    %v278 = vpop.f32.mrf.mxu0
    %v279 = vadd.f32 0.0, %v278
    %v280 = vpop.f32.mrf.mxu0
    %v281 = vadd.f32 0.0, %v280
    %282 = vmatprep.mubr.f32.mxu0 0.0
    %283 = vmatmul.mubr.f32.gmra.mxu0 %v114
    %v284 = vpop.f32.mrf.mxu0
    %v285 = vadd.f32 0.0, %v284
    %v286 = vpop.f32.mrf.mxu0
    %v287 = vadd.f32 0.0, %v286
    %288 = vmatprep.mubr.f32.mxu0 0.0
    %289 = vmatmul.mubr.f32.gmra.mxu0 %v115
    %v290 = vpop.f32.mrf.mxu0
    %v291 = vadd.f32 0.0, %v290
    %v292 = vpop.f32.mrf.mxu0
    %v293 = vadd.f32 0.0, %v292
    %294 = vmatprep.mubr.f32.mxu0 0.0
    %295 = vmatmul.mubr.f32.gmra.mxu0 %v116
    %v296 = vpop.f32.mrf.mxu0
    %v297 = vadd.f32 0.0, %v296
    %v298 = vpop.f32.mrf.mxu0
    %v299 = vadd.f32 0.0, %v298
    %300 = vmatprep.mubr.f32.mxu0 0.0
    %301 = vmatmul.mubr.f32.gmra.mxu0 %v117
    %v302 = vpop.f32.mrf.mxu0
    %v303 = vadd.f32 0.0, %v302
    %v304 = vpop.f32.mrf.mxu0
    %v305 = vadd.f32 0.0, %v304
    %306 = vmatprep.mubr.f32.mxu0 0.0
    %307 = vmatmul.mubr.f32.gmra.mxu0 %v118
    %v308 = vpop.f32.mrf.mxu0
    %v309 = vadd.f32 0.0, %v308
    %v310 = vpop.f32.mrf.mxu0
    %v311 = vadd.f32 0.0, %v310
    %312 = vmatprep.mubr.f32.mxu0 0.0
    %313 = vmatmul.mubr.f32.gmra.mxu0 %v119
    %v314 = vpop.f32.mrf.mxu0
    %v315 = vadd.f32 0.0, %v314
    %v316 = vpop.f32.mrf.mxu0
    %v317 = vadd.f32 0.0, %v316
    %318 = vmatprep.mubr.f32.mxu0 0.0
    %319 = vmatmul.mubr.f32.gmra.mxu0 %v120
    %v320 = vpop.f32.mrf.mxu0
    %v321 = vadd.f32 0.0, %v320
    %v322 = vpop.f32.mrf.mxu0
    %v323 = vadd.f32 0.0, %v322
    %324 = vmatprep.mubr.f32.mxu0 0.0
    %325 = vmatmul.mubr.f32.gmra.mxu0 %v121
    %v326 = vpop.f32.mrf.mxu0
    %v327 = vadd.f32 0.0, %v326
    %v328 = vpop.f32.mrf.mxu0
    %v329 = vadd.f32 0.0, %v328
    %330 = vmatprep.mubr.f32.mxu0 0.0
    %331 = vmatmul.mubr.f32.gmra.mxu0 %v122
    %v332 = vpop.f32.mrf.mxu0
    %v333 = vadd.f32 0.0, %v332
    %v334 = vpop.f32.mrf.mxu0
    %v335 = vadd.f32 0.0, %v334
    %336 = vmatprep.mubr.f32.mxu0 0.0
    %337 = vmatmul.mubr.f32.gmra.mxu0 %v123
    %v338 = vpop.f32.mrf.mxu0
    %v339 = vadd.f32 0.0, %v338
    %v340 = vpop.f32.mrf.mxu0
    %v341 = vadd.f32 0.0, %v340
    %342 = vmatprep.mubr.f32.mxu0 0.0
    %343 = vmatmul.mubr.f32.gmra.mxu0 %v124
    %v344 = vpop.f32.mrf.mxu0
    %v345 = vadd.f32 0.0, %v344
    %v346 = vpop.f32.mrf.mxu0
    %v347 = vadd.f32 0.0, %v346
    %348 = vmatprep.mubr.f32.mxu0 0.0
    %349 = vmatmul.mubr.f32.gmra.mxu0 %v125
    %v350 = vpop.f32.mrf.mxu0
    %v351 = vadd.f32 0.0, %v350
    %v352 = vpop.f32.mrf.mxu0
    %v353 = vadd.f32 0.0, %v352
    %354 = vmatprep.mubr.f32.mxu0 0.0
    %355 = vmatmul.mubr.f32.gmra.mxu0 %v126
    %v356 = vpop.f32.mrf.mxu0
    %v357 = vadd.f32 0.0, %v356
    %v358 = vpop.f32.mrf.mxu0
    %v359 = vadd.f32 0.0, %v358
    %360 = vmatprep.mubr.f32.mxu0 0.0
    %361 = vmatmul.mubr.f32.gmra.mxu0 %v127
    %v362 = vpop.f32.mrf.mxu0
    %v363 = vadd.f32 0.0, %v362
    %v364 = vpop.f32.mrf.mxu0
    %v365 = vadd.f32 0.0, %v364
    %366 = vmatprep.mubr.f32.mxu0 0.0
    %367 = vmatmul.mubr.f32.gmra.mxu0 %v128
    %v368 = vpop.f32.mrf.mxu0
    %v369 = vadd.f32 0.0, %v368
    %v370 = vpop.f32.mrf.mxu0
    %v371 = vadd.f32 0.0, %v370
    %372 = vmatprep.mubr.f32.mxu0 0.0
    %373 = vmatmul.mubr.f32.gmra.mxu0 %v129
    %v374 = vpop.f32.mrf.mxu0
    %v375 = vadd.f32 0.0, %v374
    %v376 = vpop.f32.mrf.mxu0
    %v377 = vadd.f32 0.0, %v376
    %378 = vmatprep.mubr.f32.mxu0 0.0
    %379 = vmatmul.mubr.f32.gmra.mxu0 %v130
    %v380 = vpop.f32.mrf.mxu0
    %v381 = vadd.f32 0.0, %v380
    %v382 = vpop.f32.mrf.mxu0
    %v383 = vadd.f32 0.0, %v382
    %384 = vmatprep.mubr.f32.mxu0 0.0
    %385 = vmatmul.mubr.f32.gmra.mxu0 %v131
    %v386 = vpop.f32.mrf.mxu0
    %v387 = vadd.f32 0.0, %v386
    %v388 = vpop.f32.mrf.mxu0
    %v389 = vadd.f32 0.0, %v388
    %390 = vmatprep.mubr.f32.mxu0 0.0
    %391 = vmatmul.mubr.f32.gmra.mxu0 %v132
    %v392 = vpop.f32.mrf.mxu0
    %v393 = vadd.f32 0.0, %v392
    %v394 = vpop.f32.mrf.mxu0
    %v395 = vadd.f32 0.0, %v394
    %396 = vmatprep.mubr.f32.mxu0 0.0
    %397 = vmatmul.mubr.f32.gmra.mxu0 %v133
    %v398 = vpop.f32.mrf.mxu0
    %v399 = vadd.f32 0.0, %v398
    %v400 = vpop.f32.mrf.mxu0
    %v401 = vadd.f32 0.0, %v400
    %402 = vmatprep.mubr.f32.mxu0 0.0
    %403 = vmatmul.mubr.f32.gmra.mxu0 %v134
    %v404 = vpop.f32.mrf.mxu0
    %v405 = vadd.f32 0.0, %v404
    %v406 = vpop.f32.mrf.mxu0
    %v407 = vadd.f32 0.0, %v406
    %408 = vmatprep.mubr.f32.mxu0 0.0
    %409 = vmatmul.mubr.f32.gmra.mxu0 %v135
    %v410 = vpop.f32.mrf.mxu0
    %v411 = vadd.f32 0.0, %v410
    %v412 = vpop.f32.mrf.mxu0
    %v413 = vadd.f32 0.0, %v412
    %414 = vmatprep.mubr.f32.mxu0 0.0
    %415 = vmatmul.mubr.f32.gmra.mxu0 %v136
    %v416 = vpop.f32.mrf.mxu0
    %v417 = vadd.f32 0.0, %v416
    %v418 = vpop.f32.mrf.mxu0
    %v419 = vadd.f32 0.0, %v418
    %420 = vmatprep.mubr.f32.mxu0 0.0
    %421 = vmatmul.mubr.f32.gmra.mxu0 %v137
    %v422 = vpop.f32.mrf.mxu0
    %v423 = vadd.f32 0.0, %v422
    %v424 = vpop.f32.mrf.mxu0
    %v425 = vadd.f32 0.0, %v424
    %426 = vmatprep.mubr.f32.mxu0 0.0
    %427 = vmatmul.mubr.f32.gmra.mxu0 %v138
    %v428 = vpop.f32.mrf.mxu0
    %v429 = vadd.f32 0.0, %v428
    %v430 = vpop.f32.mrf.mxu0
    %v431 = vadd.f32 0.0, %v430
    %432 = vmatprep.mubr.f32.mxu0 0.0
    %433 = vmatmul.mubr.f32.gmra.mxu0 %v139
    %v434 = vpop.f32.mrf.mxu0
    %v435 = vadd.f32 0.0, %v434
    %v436 = vpop.f32.mrf.mxu0
    %v437 = vadd.f32 0.0, %v436
    %438 = vmatprep.mubr.f32.mxu0 0.0
    %439 = vmatmul.mubr.f32.gmra.mxu0 %v140
    %v440 = vpop.f32.mrf.mxu0
    %v441 = vadd.f32 0.0, %v440
    %v442 = vpop.f32.mrf.mxu0
    %v443 = vadd.f32 0.0, %v442
    %444 = vmatprep.mubr.f32.mxu0 0.0
    %445 = vmatmul.mubr.f32.gmra.mxu0 %v141
    %v446 = vpop.f32.mrf.mxu0
    %v447 = vadd.f32 0.0, %v446
    %v448 = vpop.f32.mrf.mxu0
    %v449 = vadd.f32 0.0, %v448
    %450 = vmatprep.mubr.f32.mxu0 0.0
    %451 = vmatmul.mubr.f32.gmra.mxu0 %v142
    %v452 = vpop.f32.mrf.mxu0
    %v453 = vadd.f32 0.0, %v452
    %v454 = vpop.f32.mrf.mxu0
    %v455 = vadd.f32 0.0, %v454
    %456 = vmatprep.mubr.f32.mxu0 0.0
    %457 = vmatmul.mubr.f32.gmra.mxu0 %v143
    %v458 = vpop.f32.mrf.mxu0
    %v459 = vadd.f32 0.0, %v458
    %v460 = vpop.f32.mrf.mxu0
    %v461 = vadd.f32 0.0, %v460
    %462 = vmatprep.mubr.f32.mxu0 0.0
    %463 = vmatmul.mubr.f32.gmra.mxu0 %v144
    %v464 = vpop.f32.mrf.mxu0
    %v465 = vadd.f32 0.0, %v464
    %v466 = vpop.f32.mrf.mxu0
    %v467 = vadd.f32 0.0, %v466
    %468 = vmatprep.mubr.f32.mxu0 0.0
    %469 = vmatmul.mubr.f32.gmra.mxu0 %v145
    %v470 = vpop.f32.mrf.mxu0
    %v471 = vadd.f32 0.0, %v470
    %v472 = vpop.f32.mrf.mxu0
    %v473 = vadd.f32 0.0, %v472
    %474 = vmatprep.mubr.f32.mxu0 0.0
    %475 = vmatmul.mubr.f32.gmra.mxu0 %v146
    %v476 = vpop.f32.mrf.mxu0
    %v477 = vadd.f32 0.0, %v476
    %v478 = vpop.f32.mrf.mxu0
    %v479 = vadd.f32 0.0, %v478
    %480 = vmatprep.mubr.f32.mxu0 0.0
    %481 = vmatmul.mubr.f32.gmra.mxu0 %v147
    %v482 = vpop.f32.mrf.mxu0
    %v483 = vadd.f32 0.0, %v482
    %v484 = vpop.f32.mrf.mxu0
    %v485 = vadd.f32 0.0, %v484
    %486 = vmatprep.mubr.f32.mxu0 0.0
    %487 = vmatmul.mubr.f32.gmra.mxu0 %v148
    %v488 = vpop.f32.mrf.mxu0
    %v489 = vadd.f32 0.0, %v488
    %v490 = vpop.f32.mrf.mxu0
    %v491 = vadd.f32 0.0, %v490
    %492 = vmatprep.mubr.f32.mxu0 0.0
    %493 = vmatmul.mubr.f32.gmra.mxu0 %v149
    %v494 = vpop.f32.mrf.mxu0
    %v495 = vadd.f32 0.0, %v494
    %v496 = vpop.f32.mrf.mxu0
    %v497 = vadd.f32 0.0, %v496
    %498 = vmatprep.mubr.f32.mxu0 0.0
    %499 = vmatmul.mubr.f32.gmra.mxu0 %v150
    %v500 = vpop.f32.mrf.mxu0
    %v501 = vadd.f32 0.0, %v500
    %v502 = vpop.f32.mrf.mxu0
    %v503 = vadd.f32 0.0, %v502
    %504 = vmatprep.mubr.f32.mxu0 0.0
    %505 = vmatmul.mubr.f32.gmra.mxu0 %v151
    %v506 = vpop.f32.mrf.mxu0
    %v507 = vadd.f32 0.0, %v506
    %v508 = vpop.f32.mrf.mxu0
    %v509 = vadd.f32 0.0, %v508
    %510 = vmatprep.mubr.f32.mxu0 0.0
    %511 = vmatmul.mubr.f32.gmra.mxu0 %v152
    %v512 = vpop.f32.mrf.mxu0
    %v513 = vadd.f32 0.0, %v512
    %v514 = vpop.f32.mrf.mxu0
    %v515 = vadd.f32 0.0, %v514
    %516 = vmatprep.mubr.f32.mxu0 0.0
    %517 = vmatmul.mubr.f32.gmra.mxu0 %v153
    %v518 = vpop.f32.mrf.mxu0
    %v519 = vadd.f32 0.0, %v518
    %v520 = vpop.f32.mrf.mxu0
    %v521 = vadd.f32 0.0, %v520
    %522 = vmatprep.mubr.f32.mxu0 0.0
    %523 = vmatmul.mubr.f32.gmra.mxu0 %v154
    %v524 = vpop.f32.mrf.mxu0
    %v525 = vadd.f32 0.0, %v524
    %v526 = vpop.f32.mrf.mxu0
    %v527 = vadd.f32 0.0, %v526
    %528 = vmatprep.mubr.f32.mxu0 0.0
    %529 = vmatmul.mubr.f32.gmra.mxu0 %v155
    %v530 = vpop.f32.mrf.mxu0
    %v531 = vadd.f32 0.0, %v530
    %v532 = vpop.f32.mrf.mxu0
    %v533 = vadd.f32 0.0, %v532
    %534 = vmatprep.mubr.f32.mxu0 0.0
    %535 = vmatmul.mubr.f32.gmra.mxu0 %v156
    %v536 = vpop.f32.mrf.mxu0
    %v537 = vadd.f32 0.0, %v536
    %v538 = vpop.f32.mrf.mxu0
    %v539 = vadd.f32 0.0, %v538
    %540 = vmatprep.mubr.f32.mxu0 0.0
    %541 = vmatmul.mubr.f32.gmra.mxu0 %v157
    %v542 = vpop.f32.mrf.mxu0
    %v543 = vadd.f32 0.0, %v542
    %v544 = vpop.f32.mrf.mxu0
    %v545 = vadd.f32 0.0, %v544
    %546 = vmatprep.mubr.f32.mxu0 0.0
    %547 = vmatmul.mubr.f32.gmra.mxu0 %v158
    %v548 = vpop.f32.mrf.mxu0
    %v549 = vadd.f32 0.0, %v548
    %v550 = vpop.f32.mrf.mxu0
    %v551 = vadd.f32 0.0, %v550
    %552 = vmatprep.mubr.f32.mxu0 0.0
    %553 = vmatmul.mubr.f32.gmra.mxu0 %v159
    %v554 = vpop.f32.mrf.mxu0
    %v555 = vadd.f32 0.0, %v554
    %v556 = vpop.f32.mrf.mxu0
    %v557 = vadd.f32 0.0, %v556
    %558 = vmatprep.mubr.f32.mxu0 0.0
    %559 = vmatmul.mubr.f32.gmra.mxu0 %v160
    %v560 = vpop.f32.mrf.mxu0
    %v561 = vadd.f32 0.0, %v560
    %v562 = vpop.f32.mrf.mxu0
    %v563 = vadd.f32 0.0, %v562
    %564 = vmatprep.mubr.f32.mxu0 0.0
    %565 = vmatmul.mubr.f32.gmra.mxu0 %v161
    %v566 = vpop.f32.mrf.mxu0
    %v567 = vadd.f32 0.0, %v566
    %v568 = vpop.f32.mrf.mxu0
    %v569 = vadd.f32 0.0, %v568
    %570 = vmatprep.mubr.f32.mxu0 0.0
    %571 = vmatmul.mubr.f32.gmra.mxu0 %v162
    %v572 = vpop.f32.mrf.mxu0
    %v573 = vadd.f32 0.0, %v572
    %v574 = vpop.f32.mrf.mxu0
    %v575 = vadd.f32 0.0, %v574
    %576 = vmatprep.mubr.f32.mxu0 0.0
    %577 = vmatmul.mubr.f32.gmra.mxu0 %v163
    %v578 = vpop.f32.mrf.mxu0
    %v579 = vadd.f32 0.0, %v578
    %v580 = vpop.f32.mrf.mxu0
    %v581 = vadd.f32 0.0, %v580
    %582 = vmatprep.mubr.f32.mxu0 0.0
    %583 = vmatmul.mubr.f32.gmra.mxu0 %v164
    %v584 = vpop.f32.mrf.mxu0
    %v585 = vadd.f32 0.0, %v584
    %v586 = vpop.f32.mrf.mxu0
    %v587 = vadd.f32 0.0, %v586
    %588 = vmatprep.mubr.f32.mxu0 0.0
    %589 = vmatmul.mubr.f32.gmra.mxu0 %v165
    %v590 = vpop.f32.mrf.mxu0
    %v591 = vadd.f32 0.0, %v590
    %v592 = vpop.f32.mrf.mxu0
    %v593 = vadd.f32 0.0, %v592
    %594 = vmatprep.mubr.f32.mxu0 0.0
    %595 = vmatmul.mubr.f32.gmra.mxu0 %v166
    %v596 = vpop.f32.mrf.mxu0
    %v597 = vadd.f32 0.0, %v596
    %v598 = vpop.f32.mrf.mxu0
    %v599 = vadd.f32 0.0, %v598
    %600 = vmatprep.mubr.f32.mxu0 0.0
    %601 = vmatmul.mubr.f32.gmra.mxu0 %v167
    %v602 = vpop.f32.mrf.mxu0
    %v603 = vadd.f32 0.0, %v602
    %v604 = vpop.f32.mrf.mxu0
    %v605 = vadd.f32 0.0, %v604
    %606 = vmatprep.mubr.f32.mxu0 0.0
    %607 = vmatmul.mubr.f32.gmra.mxu0 %v168
    %v608 = vpop.f32.mrf.mxu0
    %v609 = vadd.f32 0.0, %v608
    %v610 = vpop.f32.mrf.mxu0
    %v611 = vadd.f32 0.0, %v610
    %612 = vmatprep.mubr.f32.mxu0 0.0
    %613 = vmatmul.mubr.f32.gmra.mxu0 %v169
    %v614 = vpop.f32.mrf.mxu0
    %v615 = vadd.f32 0.0, %v614
    %v616 = vpop.f32.mrf.mxu0
    %v617 = vadd.f32 0.0, %v616
    %618 = vdwg.mxu0
    %619 = vmatprep.subr.mxu0 0.0
    %620 = vmatpush1.xpose.msra.mxu0 %v89
    %621 = vmatprep.subr.mxu0 0.0
    %622 = vmatpush1.xpose.msra.mxu0 %v88
    %623 = vmatprep.subr.mxu0 0.0
    %624 = vmatpush1.xpose.msra.mxu0 %v87
    %625 = vmatprep.subr.mxu0 0.0
    %626 = vmatpush1.xpose.msra.mxu0 %v86
    %627 = vmatprep.subr.mxu0 0.0
    %628 = vmatpush1.xpose.msra.mxu0 %v85
    %629 = vmatprep.subr.mxu0 0.0
    %630 = vmatpush1.xpose.msra.mxu0 %v84
    %631 = vmatprep.subr.mxu0 0.0
    %632 = vmatpush1.xpose.msra.mxu0 %v83
    %633 = vmatprep.subr.mxu0 0.0
    %634 = vmatpush1.xpose.msra.mxu0 %v82
    %635 = vmatprep.subr.mxu0 0.0
    %636 = vmatpush1.xpose.msra.mxu0 %v81
    %637 = vmatprep.subr.mxu0 0.0
    %638 = vmatpush1.xpose.msra.mxu0 %v80
    %639 = vmatprep.subr.mxu0 0.0
    %640 = vmatpush1.xpose.msra.mxu0 %v79
    %641 = vmatprep.subr.mxu0 0.0
    %642 = vmatpush1.xpose.msra.mxu0 %v78
    %643 = vmatprep.subr.mxu0 0.0
    %644 = vmatpush1.xpose.msra.mxu0 %v77
    %645 = vmatprep.subr.mxu0 0.0
    %646 = vmatpush1.xpose.msra.mxu0 %v76
    %647 = vmatprep.subr.mxu0 0.0
    %648 = vmatpush1.xpose.msra.mxu0 %v75
    %649 = vmatprep.subr.mxu0 0.0
    %650 = vmatpush1.xpose.msra.mxu0 %v74
    %651 = vmatprep.subr.mxu0 0.0
    %652 = vmatpush2.xpose.msra.mxu0 %v105
    %653 = vmatprep.subr.mxu0 0.0
    %654 = vmatpush2.xpose.msra.mxu0 %v104
    %655 = vmatprep.subr.mxu0 0.0
    %656 = vmatpush2.xpose.msra.mxu0 %v103
    %657 = vmatprep.subr.mxu0 0.0
    %658 = vmatpush2.xpose.msra.mxu0 %v102
    %659 = vmatprep.subr.mxu0 0.0
    %660 = vmatpush2.xpose.msra.mxu0 %v101
    %661 = vmatprep.subr.mxu0 0.0
    %662 = vmatpush2.xpose.msra.mxu0 %v100
    %663 = vmatprep.subr.mxu0 0.0
    %664 = vmatpush2.xpose.msra.mxu0 %v99
    %665 = vmatprep.subr.mxu0 0.0
    %666 = vmatpush2.xpose.msra.mxu0 %v98
    %667 = vmatprep.subr.mxu0 0.0
    %668 = vmatpush2.xpose.msra.mxu0 %v97
    %669 = vmatprep.subr.mxu0 0.0
    %670 = vmatpush2.xpose.msra.mxu0 %v96
    %671 = vmatprep.subr.mxu0 0.0
    %672 = vmatpush2.xpose.msra.mxu0 %v95
    %673 = vmatprep.subr.mxu0 0.0
    %674 = vmatpush2.xpose.msra.mxu0 %v94
    %675 = vmatprep.subr.mxu0 0.0
    %676 = vmatpush2.xpose.msra.mxu0 %v93
    %677 = vmatprep.subr.mxu0 0.0
    %678 = vmatpush2.xpose.msra.mxu0 %v92
    %679 = vmatprep.subr.mxu0 0.0
    %680 = vmatpush2.xpose.msra.mxu0 %v91
    %681 = vmatprep.subr.mxu0 0.0
    %682 = vmatpush2.xpose.msra.mxu0 %v90
    %683 = vmatprep.mubr.f32.mxu0 0.0
    %684 = vmatmul.mubr.f32.gmra.mxu0 %v106
    %v685 = vpop.f32.mrf.mxu0
    %v686 = vadd.f32 0.0, %v685
    %v687 = vpop.f32.mrf.mxu0
    %v688 = vadd.f32 0.0, %v687
    %689 = vmatprep.mubr.f32.mxu0 0.0
    %690 = vmatmul.mubr.f32.gmra.mxu0 %v107
    %v691 = vpop.f32.mrf.mxu0
    %v692 = vadd.f32 0.0, %v691
    %v693 = vpop.f32.mrf.mxu0
    %v694 = vadd.f32 0.0, %v693
    %695 = vmatprep.mubr.f32.mxu0 0.0
    %696 = vmatmul.mubr.f32.gmra.mxu0 %v108
    %v697 = vpop.f32.mrf.mxu0
    %v698 = vadd.f32 0.0, %v697
    %v699 = vpop.f32.mrf.mxu0
    %v700 = vadd.f32 0.0, %v699
    %701 = vmatprep.mubr.f32.mxu0 0.0
    %702 = vmatmul.mubr.f32.gmra.mxu0 %v109
    %v703 = vpop.f32.mrf.mxu0
    %v704 = vadd.f32 0.0, %v703
    %v705 = vpop.f32.mrf.mxu0
    %v706 = vadd.f32 0.0, %v705
    %707 = vmatprep.mubr.f32.mxu0 0.0
    %708 = vmatmul.mubr.f32.gmra.mxu0 %v110
    %v709 = vpop.f32.mrf.mxu0
    %v710 = vadd.f32 0.0, %v709
    %v711 = vpop.f32.mrf.mxu0
    %v712 = vadd.f32 0.0, %v711
    %713 = vmatprep.mubr.f32.mxu0 0.0
    %714 = vmatmul.mubr.f32.gmra.mxu0 %v111
    %v715 = vpop.f32.mrf.mxu0
    %v716 = vadd.f32 0.0, %v715
    %v717 = vpop.f32.mrf.mxu0
    %v718 = vadd.f32 0.0, %v717
    %719 = vmatprep.mubr.f32.mxu0 0.0
    %720 = vmatmul.mubr.f32.gmra.mxu0 %v112
    %v721 = vpop.f32.mrf.mxu0
    %v722 = vadd.f32 0.0, %v721
    %v723 = vpop.f32.mrf.mxu0
    %v724 = vadd.f32 0.0, %v723
    %725 = vmatprep.mubr.f32.mxu0 0.0
    %726 = vmatmul.mubr.f32.gmra.mxu0 %v113
    %v727 = vpop.f32.mrf.mxu0
    %v728 = vadd.f32 0.0, %v727
    %v729 = vpop.f32.mrf.mxu0
    %v730 = vadd.f32 0.0, %v729
    %731 = vmatprep.mubr.f32.mxu0 0.0
    %732 = vmatmul.mubr.f32.gmra.mxu0 %v114
    %v733 = vpop.f32.mrf.mxu0
    %v734 = vadd.f32 0.0, %v733
    %v735 = vpop.f32.mrf.mxu0
    %v736 = vadd.f32 0.0, %v735
    %737 = vmatprep.mubr.f32.mxu0 0.0
    %738 = vmatmul.mubr.f32.gmra.mxu0 %v115
    %v739 = vpop.f32.mrf.mxu0
    %v740 = vadd.f32 0.0, %v739
    %v741 = vpop.f32.mrf.mxu0
    %v742 = vadd.f32 0.0, %v741
    %743 = vmatprep.mubr.f32.mxu0 0.0
    %744 = vmatmul.mubr.f32.gmra.mxu0 %v116
    %v745 = vpop.f32.mrf.mxu0
    %v746 = vadd.f32 0.0, %v745
    %v747 = vpop.f32.mrf.mxu0
    %v748 = vadd.f32 0.0, %v747
    %749 = vmatprep.mubr.f32.mxu0 0.0
    %750 = vmatmul.mubr.f32.gmra.mxu0 %v117
    %v751 = vpop.f32.mrf.mxu0
    %v752 = vadd.f32 0.0, %v751
    %v753 = vpop.f32.mrf.mxu0
    %v754 = vadd.f32 0.0, %v753
    %755 = vmatprep.mubr.f32.mxu0 0.0
    %756 = vmatmul.mubr.f32.gmra.mxu0 %v118
    %v757 = vpop.f32.mrf.mxu0
    %v758 = vadd.f32 0.0, %v757
    %v759 = vpop.f32.mrf.mxu0
    %v760 = vadd.f32 0.0, %v759
    %761 = vmatprep.mubr.f32.mxu0 0.0
    %762 = vmatmul.mubr.f32.gmra.mxu0 %v119
    %v763 = vpop.f32.mrf.mxu0
    %v764 = vadd.f32 0.0, %v763
    %v765 = vpop.f32.mrf.mxu0
    %v766 = vadd.f32 0.0, %v765
    %767 = vmatprep.mubr.f32.mxu0 0.0
    %768 = vmatmul.mubr.f32.gmra.mxu0 %v120
    %v769 = vpop.f32.mrf.mxu0
    %v770 = vadd.f32 0.0, %v769
    %v771 = vpop.f32.mrf.mxu0
    %v772 = vadd.f32 0.0, %v771
    %773 = vmatprep.mubr.f32.mxu0 0.0
    %774 = vmatmul.mubr.f32.gmra.mxu0 %v121
    %v775 = vpop.f32.mrf.mxu0
    %v776 = vadd.f32 0.0, %v775
    %v777 = vpop.f32.mrf.mxu0
    %v778 = vadd.f32 0.0, %v777
    %779 = vmatprep.mubr.f32.mxu0 0.0
    %780 = vmatmul.mubr.f32.gmra.mxu0 %v122
    %v781 = vpop.f32.mrf.mxu0
    %v782 = vadd.f32 0.0, %v781
    %v783 = vpop.f32.mrf.mxu0
    %v784 = vadd.f32 0.0, %v783
    %785 = vmatprep.mubr.f32.mxu0 0.0
    %786 = vmatmul.mubr.f32.gmra.mxu0 %v123
    %v787 = vpop.f32.mrf.mxu0
    %v788 = vadd.f32 0.0, %v787
    %v789 = vpop.f32.mrf.mxu0
    %v790 = vadd.f32 0.0, %v789
    %791 = vmatprep.mubr.f32.mxu0 0.0
    %792 = vmatmul.mubr.f32.gmra.mxu0 %v124
    %v793 = vpop.f32.mrf.mxu0
    %v794 = vadd.f32 0.0, %v793
    %v795 = vpop.f32.mrf.mxu0
    %v796 = vadd.f32 0.0, %v795
    %797 = vmatprep.mubr.f32.mxu0 0.0
    %798 = vmatmul.mubr.f32.gmra.mxu0 %v125
    %v799 = vpop.f32.mrf.mxu0
    %v800 = vadd.f32 0.0, %v799
    %v801 = vpop.f32.mrf.mxu0
    %v802 = vadd.f32 0.0, %v801
    %803 = vmatprep.mubr.f32.mxu0 0.0
    %804 = vmatmul.mubr.f32.gmra.mxu0 %v126
    %v805 = vpop.f32.mrf.mxu0
    %v806 = vadd.f32 0.0, %v805
    %v807 = vpop.f32.mrf.mxu0
    %v808 = vadd.f32 0.0, %v807
    %809 = vmatprep.mubr.f32.mxu0 0.0
    %810 = vmatmul.mubr.f32.gmra.mxu0 %v127
    %v811 = vpop.f32.mrf.mxu0
    %v812 = vadd.f32 0.0, %v811
    %v813 = vpop.f32.mrf.mxu0
    %v814 = vadd.f32 0.0, %v813
    %815 = vmatprep.mubr.f32.mxu0 0.0
    %816 = vmatmul.mubr.f32.gmra.mxu0 %v128
    %v817 = vpop.f32.mrf.mxu0
    %v818 = vadd.f32 0.0, %v817
    %v819 = vpop.f32.mrf.mxu0
    %v820 = vadd.f32 0.0, %v819
    %821 = vmatprep.mubr.f32.mxu0 0.0
    %822 = vmatmul.mubr.f32.gmra.mxu0 %v129
    %v823 = vpop.f32.mrf.mxu0
    %v824 = vadd.f32 0.0, %v823
    %v825 = vpop.f32.mrf.mxu0
    %v826 = vadd.f32 0.0, %v825
    %827 = vmatprep.mubr.f32.mxu0 0.0
    %828 = vmatmul.mubr.f32.gmra.mxu0 %v130
    %v829 = vpop.f32.mrf.mxu0
    %v830 = vadd.f32 0.0, %v829
    %v831 = vpop.f32.mrf.mxu0
    %v832 = vadd.f32 0.0, %v831
    %833 = vmatprep.mubr.f32.mxu0 0.0
    %834 = vmatmul.mubr.f32.gmra.mxu0 %v131
    %v835 = vpop.f32.mrf.mxu0
    %v836 = vadd.f32 0.0, %v835
    %v837 = vpop.f32.mrf.mxu0
    %v838 = vadd.f32 0.0, %v837
    %839 = vmatprep.mubr.f32.mxu0 0.0
    %840 = vmatmul.mubr.f32.gmra.mxu0 %v132
    %v841 = vpop.f32.mrf.mxu0
    %v842 = vadd.f32 0.0, %v841
    %v843 = vpop.f32.mrf.mxu0
    %v844 = vadd.f32 0.0, %v843
    %845 = vmatprep.mubr.f32.mxu0 0.0
    %846 = vmatmul.mubr.f32.gmra.mxu0 %v133
    %v847 = vpop.f32.mrf.mxu0
    %v848 = vadd.f32 0.0, %v847
    %v849 = vpop.f32.mrf.mxu0
    %v850 = vadd.f32 0.0, %v849
    %851 = vmatprep.mubr.f32.mxu0 0.0
    %852 = vmatmul.mubr.f32.gmra.mxu0 %v134
    %v853 = vpop.f32.mrf.mxu0
    %v854 = vadd.f32 0.0, %v853
    %v855 = vpop.f32.mrf.mxu0
    %v856 = vadd.f32 0.0, %v855
    %857 = vmatprep.mubr.f32.mxu0 0.0
    %858 = vmatmul.mubr.f32.gmra.mxu0 %v135
    %v859 = vpop.f32.mrf.mxu0
    %v860 = vadd.f32 0.0, %v859
    %v861 = vpop.f32.mrf.mxu0
    %v862 = vadd.f32 0.0, %v861
    %863 = vmatprep.mubr.f32.mxu0 0.0
    %864 = vmatmul.mubr.f32.gmra.mxu0 %v136
    %v865 = vpop.f32.mrf.mxu0
    %v866 = vadd.f32 0.0, %v865
    %v867 = vpop.f32.mrf.mxu0
    %v868 = vadd.f32 0.0, %v867
    %869 = vmatprep.mubr.f32.mxu0 0.0
    %870 = vmatmul.mubr.f32.gmra.mxu0 %v137
    %v871 = vpop.f32.mrf.mxu0
    %v872 = vadd.f32 0.0, %v871
    %v873 = vpop.f32.mrf.mxu0
    %v874 = vadd.f32 0.0, %v873
    %875 = vmatprep.mubr.f32.mxu0 0.0
    %876 = vmatmul.mubr.f32.gmra.mxu0 %v138
    %v877 = vpop.f32.mrf.mxu0
    %v878 = vadd.f32 0.0, %v877
    %v879 = vpop.f32.mrf.mxu0
    %v880 = vadd.f32 0.0, %v879
    %881 = vmatprep.mubr.f32.mxu0 0.0
    %882 = vmatmul.mubr.f32.gmra.mxu0 %v139
    %v883 = vpop.f32.mrf.mxu0
    %v884 = vadd.f32 0.0, %v883
    %v885 = vpop.f32.mrf.mxu0
    %v886 = vadd.f32 0.0, %v885
    %887 = vmatprep.mubr.f32.mxu0 0.0
    %888 = vmatmul.mubr.f32.gmra.mxu0 %v140
    %v889 = vpop.f32.mrf.mxu0
    %v890 = vadd.f32 0.0, %v889
    %v891 = vpop.f32.mrf.mxu0
    %v892 = vadd.f32 0.0, %v891
    %893 = vmatprep.mubr.f32.mxu0 0.0
    %894 = vmatmul.mubr.f32.gmra.mxu0 %v141
    %v895 = vpop.f32.mrf.mxu0
    %v896 = vadd.f32 0.0, %v895
    %v897 = vpop.f32.mrf.mxu0
    %v898 = vadd.f32 0.0, %v897
    %899 = vmatprep.mubr.f32.mxu0 0.0
    %900 = vmatmul.mubr.f32.gmra.mxu0 %v142
    %v901 = vpop.f32.mrf.mxu0
    %v902 = vadd.f32 0.0, %v901
    %v903 = vpop.f32.mrf.mxu0
    %v904 = vadd.f32 0.0, %v903
    %905 = vmatprep.mubr.f32.mxu0 0.0
    %906 = vmatmul.mubr.f32.gmra.mxu0 %v143
    %v907 = vpop.f32.mrf.mxu0
    %v908 = vadd.f32 0.0, %v907
    %v909 = vpop.f32.mrf.mxu0
    %v910 = vadd.f32 0.0, %v909
    %911 = vmatprep.mubr.f32.mxu0 0.0
    %912 = vmatmul.mubr.f32.gmra.mxu0 %v144
    %v913 = vpop.f32.mrf.mxu0
    %v914 = vadd.f32 0.0, %v913
    %v915 = vpop.f32.mrf.mxu0
    %v916 = vadd.f32 0.0, %v915
    %917 = vmatprep.mubr.f32.mxu0 0.0
    %918 = vmatmul.mubr.f32.gmra.mxu0 %v145
    %v919 = vpop.f32.mrf.mxu0
    %v920 = vadd.f32 0.0, %v919
    %v921 = vpop.f32.mrf.mxu0
    %v922 = vadd.f32 0.0, %v921
    %923 = vmatprep.mubr.f32.mxu0 0.0
    %924 = vmatmul.mubr.f32.gmra.mxu0 %v146
    %v925 = vpop.f32.mrf.mxu0
    %v926 = vadd.f32 0.0, %v925
    %v927 = vpop.f32.mrf.mxu0
    %v928 = vadd.f32 0.0, %v927
    %929 = vmatprep.mubr.f32.mxu0 0.0
    %930 = vmatmul.mubr.f32.gmra.mxu0 %v147
    %v931 = vpop.f32.mrf.mxu0
    %v932 = vadd.f32 0.0, %v931
    %v933 = vpop.f32.mrf.mxu0
    %v934 = vadd.f32 0.0, %v933
    %935 = vmatprep.mubr.f32.mxu0 0.0
    %936 = vmatmul.mubr.f32.gmra.mxu0 %v148
    %v937 = vpop.f32.mrf.mxu0
    %v938 = vadd.f32 0.0, %v937
    %v939 = vpop.f32.mrf.mxu0
    %v940 = vadd.f32 0.0, %v939
    %941 = vmatprep.mubr.f32.mxu0 0.0
    %942 = vmatmul.mubr.f32.gmra.mxu0 %v149
    %v943 = vpop.f32.mrf.mxu0
    %v944 = vadd.f32 0.0, %v943
    %v945 = vpop.f32.mrf.mxu0
    %v946 = vadd.f32 0.0, %v945
    %947 = vmatprep.mubr.f32.mxu0 0.0
    %948 = vmatmul.mubr.f32.gmra.mxu0 %v150
    %v949 = vpop.f32.mrf.mxu0
    %v950 = vadd.f32 0.0, %v949
    %v951 = vpop.f32.mrf.mxu0
    %v952 = vadd.f32 0.0, %v951
    %953 = vmatprep.mubr.f32.mxu0 0.0
    %954 = vmatmul.mubr.f32.gmra.mxu0 %v151
    %v955 = vpop.f32.mrf.mxu0
    %v956 = vadd.f32 0.0, %v955
    %v957 = vpop.f32.mrf.mxu0
    %v958 = vadd.f32 0.0, %v957
    %959 = vmatprep.mubr.f32.mxu0 0.0
    %960 = vmatmul.mubr.f32.gmra.mxu0 %v152
    %v961 = vpop.f32.mrf.mxu0
    %v962 = vadd.f32 0.0, %v961
    %v963 = vpop.f32.mrf.mxu0
    %v964 = vadd.f32 0.0, %v963
    %965 = vmatprep.mubr.f32.mxu0 0.0
    %966 = vmatmul.mubr.f32.gmra.mxu0 %v153
    %v967 = vpop.f32.mrf.mxu0
    %v968 = vadd.f32 0.0, %v967
    %v969 = vpop.f32.mrf.mxu0
    %v970 = vadd.f32 0.0, %v969
    %971 = vmatprep.mubr.f32.mxu0 0.0
    %972 = vmatmul.mubr.f32.gmra.mxu0 %v154
    %v973 = vpop.f32.mrf.mxu0
    %v974 = vadd.f32 0.0, %v973
    %v975 = vpop.f32.mrf.mxu0
    %v976 = vadd.f32 0.0, %v975
    %977 = vmatprep.mubr.f32.mxu0 0.0
    %978 = vmatmul.mubr.f32.gmra.mxu0 %v155
    %v979 = vpop.f32.mrf.mxu0
    %v980 = vadd.f32 0.0, %v979
    %v981 = vpop.f32.mrf.mxu0
    %v982 = vadd.f32 0.0, %v981
    %983 = vmatprep.mubr.f32.mxu0 0.0
    %984 = vmatmul.mubr.f32.gmra.mxu0 %v156
    %v985 = vpop.f32.mrf.mxu0
    %v986 = vadd.f32 0.0, %v985
    %v987 = vpop.f32.mrf.mxu0
    %v988 = vadd.f32 0.0, %v987
    %989 = vmatprep.mubr.f32.mxu0 0.0
    %990 = vmatmul.mubr.f32.gmra.mxu0 %v157
    %v991 = vpop.f32.mrf.mxu0
    %v992 = vadd.f32 0.0, %v991
    %v993 = vpop.f32.mrf.mxu0
    %v994 = vadd.f32 0.0, %v993
    %995 = vmatprep.mubr.f32.mxu0 0.0
    %996 = vmatmul.mubr.f32.gmra.mxu0 %v158
    %v997 = vpop.f32.mrf.mxu0
    %v998 = vadd.f32 0.0, %v997
    %v999 = vpop.f32.mrf.mxu0
    %v1000 = vadd.f32 0.0, %v999
    %1001 = vmatprep.mubr.f32.mxu0 0.0
    %1002 = vmatmul.mubr.f32.gmra.mxu0 %v159
    %v1003 = vpop.f32.mrf.mxu0
    %v1004 = vadd.f32 0.0, %v1003
    %v1005 = vpop.f32.mrf.mxu0
    %v1006 = vadd.f32 0.0, %v1005
    %1007 = vmatprep.mubr.f32.mxu0 0.0
    %1008 = vmatmul.mubr.f32.gmra.mxu0 %v160
    %v1009 = vpop.f32.mrf.mxu0
    %v1010 = vadd.f32 0.0, %v1009
    %v1011 = vpop.f32.mrf.mxu0
    %v1012 = vadd.f32 0.0, %v1011
    %1013 = vmatprep.mubr.f32.mxu0 0.0
    %1014 = vmatmul.mubr.f32.gmra.mxu0 %v161
    %v1015 = vpop.f32.mrf.mxu0
    %v1016 = vadd.f32 0.0, %v1015
    %v1017 = vpop.f32.mrf.mxu0
    %v1018 = vadd.f32 0.0, %v1017
    %1019 = vmatprep.mubr.f32.mxu0 0.0
    %1020 = vmatmul.mubr.f32.gmra.mxu0 %v162
    %v1021 = vpop.f32.mrf.mxu0
    %v1022 = vadd.f32 0.0, %v1021
    %v1023 = vpop.f32.mrf.mxu0
    %v1024 = vadd.f32 0.0, %v1023
    %1025 = vmatprep.mubr.f32.mxu0 0.0
    %1026 = vmatmul.mubr.f32.gmra.mxu0 %v163
    %v1027 = vpop.f32.mrf.mxu0
    %v1028 = vadd.f32 0.0, %v1027
    %v1029 = vpop.f32.mrf.mxu0
    %v1030 = vadd.f32 0.0, %v1029
    %1031 = vmatprep.mubr.f32.mxu0 0.0
    %1032 = vmatmul.mubr.f32.gmra.mxu0 %v164
    %v1033 = vpop.f32.mrf.mxu0
    %v1034 = vadd.f32 0.0, %v1033
    %v1035 = vpop.f32.mrf.mxu0
    %v1036 = vadd.f32 0.0, %v1035
    %1037 = vmatprep.mubr.f32.mxu0 0.0
    %1038 = vmatmul.mubr.f32.gmra.mxu0 %v165
    %v1039 = vpop.f32.mrf.mxu0
    %v1040 = vadd.f32 0.0, %v1039
    %v1041 = vpop.f32.mrf.mxu0
    %v1042 = vadd.f32 0.0, %v1041
    %1043 = vmatprep.mubr.f32.mxu0 0.0
    %1044 = vmatmul.mubr.f32.gmra.mxu0 %v166
    %v1045 = vpop.f32.mrf.mxu0
    %v1046 = vadd.f32 0.0, %v1045
    %v1047 = vpop.f32.mrf.mxu0
    %v1048 = vadd.f32 0.0, %v1047
    %1049 = vmatprep.mubr.f32.mxu0 0.0
    %1050 = vmatmul.mubr.f32.gmra.mxu0 %v167
    %v1051 = vpop.f32.mrf.mxu0
    %v1052 = vadd.f32 0.0, %v1051
    %v1053 = vpop.f32.mrf.mxu0
    %v1054 = vadd.f32 0.0, %v1053
    %1055 = vmatprep.mubr.f32.mxu0 0.0
    %1056 = vmatmul.mubr.f32.gmra.mxu0 %v168
    %v1057 = vpop.f32.mrf.mxu0
    %v1058 = vadd.f32 0.0, %v1057
    %v1059 = vpop.f32.mrf.mxu0
    %v1060 = vadd.f32 0.0, %v1059
    %1061 = vmatprep.mubr.f32.mxu0 0.0
    %1062 = vmatmul.mubr.f32.gmra.mxu0 %v169
    %v1063 = vpop.f32.mrf.mxu0
    %v1064 = vadd.f32 0.0, %v1063
    %v1065 = vpop.f32.mrf.mxu0
    %v1066 = vadd.f32 0.0, %v1065
    %1067 = vdwg.mxu0
    %v1068 = vmul.f32 %v237, 0.5
    %v1069 = vmul.f32 %v239, 0.5
    %v1070 = vmul.f32 %v686, 0.5
    %v1071 = vmul.f32 %v688, 0.5
    %v1072 = vmul.f32 %v243, 0.5
    %v1073 = vmul.f32 %v245, 0.5
    %v1074 = vmul.f32 %v692, 0.5
    %v1075 = vmul.f32 %v694, 0.5
    %v1076 = vmul.f32 %v249, 0.5
    %v1077 = vmul.f32 %v251, 0.5
    %v1078 = vmul.f32 %v698, 0.5
    %v1079 = vmul.f32 %v700, 0.5
    %v1080 = vmul.f32 %v255, 0.5
    %v1081 = vmul.f32 %v257, 0.5
    %v1082 = vmul.f32 %v704, 0.5
    %v1083 = vmul.f32 %v706, 0.5
    %v1084 = vmul.f32 %v261, 0.5
    %v1085 = vmul.f32 %v263, 0.5
    %v1086 = vmul.f32 %v710, 0.5
    %v1087 = vmul.f32 %v712, 0.5
    %v1088 = vmul.f32 %v267, 0.5
    %v1089 = vmul.f32 %v269, 0.5
    %v1090 = vmul.f32 %v716, 0.5
    %v1091 = vmul.f32 %v718, 0.5
    %v1092 = vmul.f32 %v273, 0.5
    %v1093 = vmul.f32 %v275, 0.5
    %v1094 = vmul.f32 %v722, 0.5
    %v1095 = vmul.f32 %v724, 0.5
    %v1096 = vmul.f32 %v279, 0.5
    %v1097 = vmul.f32 %v281, 0.5
    %v1098 = vmul.f32 %v728, 0.5
    %v1099 = vmul.f32 %v730, 0.5
    %v1100 = vmul.f32 %v285, 0.5
    %v1101 = vmul.f32 %v287, 0.5
    %v1102 = vmul.f32 %v734, 0.5
    %v1103 = vmul.f32 %v736, 0.5
    %v1104 = vmul.f32 %v291, 0.5
    %v1105 = vmul.f32 %v293, 0.5
    %v1106 = vmul.f32 %v740, 0.5
    %v1107 = vmul.f32 %v742, 0.5
    %v1108 = vmul.f32 %v297, 0.5
    %v1109 = vmul.f32 %v299, 0.5
    %v1110 = vmul.f32 %v746, 0.5
    %v1111 = vmul.f32 %v748, 0.5
    %v1112 = vmul.f32 %v303, 0.5
    %v1113 = vmul.f32 %v305, 0.5
    %v1114 = vmul.f32 %v752, 0.5
    %v1115 = vmul.f32 %v754, 0.5
    %v1116 = vmul.f32 %v309, 0.5
    %v1117 = vmul.f32 %v311, 0.5
    %v1118 = vmul.f32 %v758, 0.5
    %v1119 = vmul.f32 %v760, 0.5
    %v1120 = vmul.f32 %v315, 0.5
    %v1121 = vmul.f32 %v317, 0.5
    %v1122 = vmul.f32 %v764, 0.5
    %v1123 = vmul.f32 %v766, 0.5
    %v1124 = vmul.f32 %v321, 0.5
    %v1125 = vmul.f32 %v323, 0.5
    %v1126 = vmul.f32 %v770, 0.5
    %v1127 = vmul.f32 %v772, 0.5
    %v1128 = vmul.f32 %v327, 0.5
    %v1129 = vmul.f32 %v329, 0.5
    %v1130 = vmul.f32 %v776, 0.5
    %v1131 = vmul.f32 %v778, 0.5
    %v1132 = vmul.f32 %v333, 0.5
    %v1133 = vmul.f32 %v335, 0.5
    %v1134 = vmul.f32 %v782, 0.5
    %v1135 = vmul.f32 %v784, 0.5
    %v1136 = vmul.f32 %v339, 0.5
    %v1137 = vmul.f32 %v341, 0.5
    %v1138 = vmul.f32 %v788, 0.5
    %v1139 = vmul.f32 %v790, 0.5
    %v1140 = vmul.f32 %v345, 0.5
    %v1141 = vmul.f32 %v347, 0.5
    %v1142 = vmul.f32 %v794, 0.5
    %v1143 = vmul.f32 %v796, 0.5
    %v1144 = vmul.f32 %v351, 0.5
    %v1145 = vmul.f32 %v353, 0.5
    %v1146 = vmul.f32 %v800, 0.5
    %v1147 = vmul.f32 %v802, 0.5
    %v1148 = vmul.f32 %v357, 0.5
    %v1149 = vmul.f32 %v359, 0.5
    %v1150 = vmul.f32 %v806, 0.5
    %v1151 = vmul.f32 %v808, 0.5
    %v1152 = vmul.f32 %v363, 0.5
    %v1153 = vmul.f32 %v365, 0.5
    %v1154 = vmul.f32 %v812, 0.5
    %v1155 = vmul.f32 %v814, 0.5
    %v1156 = vmul.f32 %v369, 0.5
    %v1157 = vmul.f32 %v371, 0.5
    %v1158 = vmul.f32 %v818, 0.5
    %v1159 = vmul.f32 %v820, 0.5
    %v1160 = vmul.f32 %v375, 0.5
    %v1161 = vmul.f32 %v377, 0.5
    %v1162 = vmul.f32 %v824, 0.5
    %v1163 = vmul.f32 %v826, 0.5
    %v1164 = vmul.f32 %v381, 0.5
    %v1165 = vmul.f32 %v383, 0.5
    %v1166 = vmul.f32 %v830, 0.5
    %v1167 = vmul.f32 %v832, 0.5
    %v1168 = vmul.f32 %v387, 0.5
    %v1169 = vmul.f32 %v389, 0.5
    %v1170 = vmul.f32 %v836, 0.5
    %v1171 = vmul.f32 %v838, 0.5
    %v1172 = vmul.f32 %v393, 0.5
    %v1173 = vmul.f32 %v395, 0.5
    %v1174 = vmul.f32 %v842, 0.5
    %v1175 = vmul.f32 %v844, 0.5
    %v1176 = vmul.f32 %v399, 0.5
    %v1177 = vmul.f32 %v401, 0.5
    %v1178 = vmul.f32 %v848, 0.5
    %v1179 = vmul.f32 %v850, 0.5
    %v1180 = vmul.f32 %v405, 0.5
    %v1181 = vmul.f32 %v407, 0.5
    %v1182 = vmul.f32 %v854, 0.5
    %v1183 = vmul.f32 %v856, 0.5
    %v1184 = vmul.f32 %v411, 0.5
    %v1185 = vmul.f32 %v413, 0.5
    %v1186 = vmul.f32 %v860, 0.5
    %v1187 = vmul.f32 %v862, 0.5
    %v1188 = vmul.f32 %v417, 0.5
    %v1189 = vmul.f32 %v419, 0.5
    %v1190 = vmul.f32 %v866, 0.5
    %v1191 = vmul.f32 %v868, 0.5
    %v1192 = vmul.f32 %v423, 0.5
    %v1193 = vmul.f32 %v425, 0.5
    %v1194 = vmul.f32 %v872, 0.5
    %v1195 = vmul.f32 %v874, 0.5
    %v1196 = vmul.f32 %v429, 0.5
    %v1197 = vmul.f32 %v431, 0.5
    %v1198 = vmul.f32 %v878, 0.5
    %v1199 = vmul.f32 %v880, 0.5
    %v1200 = vmul.f32 %v435, 0.5
    %v1201 = vmul.f32 %v437, 0.5
    %v1202 = vmul.f32 %v884, 0.5
    %v1203 = vmul.f32 %v886, 0.5
    %v1204 = vmul.f32 %v441, 0.5
    %v1205 = vmul.f32 %v443, 0.5
    %v1206 = vmul.f32 %v890, 0.5
    %v1207 = vmul.f32 %v892, 0.5
    %v1208 = vmul.f32 %v447, 0.5
    %v1209 = vmul.f32 %v449, 0.5
    %v1210 = vmul.f32 %v896, 0.5
    %v1211 = vmul.f32 %v898, 0.5
    %v1212 = vmul.f32 %v453, 0.5
    %v1213 = vmul.f32 %v455, 0.5
    %v1214 = vmul.f32 %v902, 0.5
    %v1215 = vmul.f32 %v904, 0.5
    %v1216 = vmul.f32 %v459, 0.5
    %v1217 = vmul.f32 %v461, 0.5
    %v1218 = vmul.f32 %v908, 0.5
    %v1219 = vmul.f32 %v910, 0.5
    %v1220 = vmul.f32 %v465, 0.5
    %v1221 = vmul.f32 %v467, 0.5
    %v1222 = vmul.f32 %v914, 0.5
    %v1223 = vmul.f32 %v916, 0.5
    %v1224 = vmul.f32 %v471, 0.5
    %v1225 = vmul.f32 %v473, 0.5
    %v1226 = vmul.f32 %v920, 0.5
    %v1227 = vmul.f32 %v922, 0.5
    %v1228 = vmul.f32 %v477, 0.5
    %v1229 = vmul.f32 %v479, 0.5
    %v1230 = vmul.f32 %v926, 0.5
    %v1231 = vmul.f32 %v928, 0.5
    %v1232 = vmul.f32 %v483, 0.5
    %v1233 = vmul.f32 %v485, 0.5
    %v1234 = vmul.f32 %v932, 0.5
    %v1235 = vmul.f32 %v934, 0.5
    %v1236 = vmul.f32 %v489, 0.5
    %v1237 = vmul.f32 %v491, 0.5
    %v1238 = vmul.f32 %v938, 0.5
    %v1239 = vmul.f32 %v940, 0.5
    %v1240 = vmul.f32 %v495, 0.5
    %v1241 = vmul.f32 %v497, 0.5
    %v1242 = vmul.f32 %v944, 0.5
    %v1243 = vmul.f32 %v946, 0.5
    %v1244 = vmul.f32 %v501, 0.5
    %v1245 = vmul.f32 %v503, 0.5
    %v1246 = vmul.f32 %v950, 0.5
    %v1247 = vmul.f32 %v952, 0.5
    %v1248 = vmul.f32 %v507, 0.5
    %v1249 = vmul.f32 %v509, 0.5
    %v1250 = vmul.f32 %v956, 0.5
    %v1251 = vmul.f32 %v958, 0.5
    %v1252 = vmul.f32 %v513, 0.5
    %v1253 = vmul.f32 %v515, 0.5
    %v1254 = vmul.f32 %v962, 0.5
    %v1255 = vmul.f32 %v964, 0.5
    %v1256 = vmul.f32 %v519, 0.5
    %v1257 = vmul.f32 %v521, 0.5
    %v1258 = vmul.f32 %v968, 0.5
    %v1259 = vmul.f32 %v970, 0.5
    %v1260 = vmul.f32 %v525, 0.5
    %v1261 = vmul.f32 %v527, 0.5
    %v1262 = vmul.f32 %v974, 0.5
    %v1263 = vmul.f32 %v976, 0.5
    %v1264 = vmul.f32 %v531, 0.5
    %v1265 = vmul.f32 %v533, 0.5
    %v1266 = vmul.f32 %v980, 0.5
    %v1267 = vmul.f32 %v982, 0.5
    %v1268 = vmul.f32 %v537, 0.5
    %v1269 = vmul.f32 %v539, 0.5
    %v1270 = vmul.f32 %v986, 0.5
    %v1271 = vmul.f32 %v988, 0.5
    %v1272 = vmul.f32 %v543, 0.5
    %v1273 = vmul.f32 %v545, 0.5
    %v1274 = vmul.f32 %v992, 0.5
    %v1275 = vmul.f32 %v994, 0.5
    %v1276 = vmul.f32 %v549, 0.5
    %v1277 = vmul.f32 %v551, 0.5
    %v1278 = vmul.f32 %v998, 0.5
    %v1279 = vmul.f32 %v1000, 0.5
    %v1280 = vmul.f32 %v555, 0.5
    %v1281 = vmul.f32 %v557, 0.5
    %v1282 = vmul.f32 %v1004, 0.5
    %v1283 = vmul.f32 %v1006, 0.5
    %v1284 = vmul.f32 %v561, 0.5
    %v1285 = vmul.f32 %v563, 0.5
    %v1286 = vmul.f32 %v1010, 0.5
    %v1287 = vmul.f32 %v1012, 0.5
    %v1288 = vmul.f32 %v567, 0.5
    %v1289 = vmul.f32 %v569, 0.5
    %v1290 = vmul.f32 %v1016, 0.5
    %v1291 = vmul.f32 %v1018, 0.5
    %v1292 = vmul.f32 %v573, 0.5
    %v1293 = vmul.f32 %v575, 0.5
    %v1294 = vmul.f32 %v1022, 0.5
    %v1295 = vmul.f32 %v1024, 0.5
    %v1296 = vmul.f32 %v579, 0.5
    %v1297 = vmul.f32 %v581, 0.5
    %v1298 = vmul.f32 %v1028, 0.5
    %v1299 = vmul.f32 %v1030, 0.5
    %v1300 = vmul.f32 %v585, 0.5
    %v1301 = vmul.f32 %v587, 0.5
    %v1302 = vmul.f32 %v1034, 0.5
    %v1303 = vmul.f32 %v1036, 0.5
    %v1304 = vmul.f32 %v591, 0.5
    %v1305 = vmul.f32 %v593, 0.5
    %v1306 = vmul.f32 %v1040, 0.5
    %v1307 = vmul.f32 %v1042, 0.5
    %v1308 = vmul.f32 %v597, 0.5
    %v1309 = vmul.f32 %v599, 0.5
    %v1310 = vmul.f32 %v1046, 0.5
    %v1311 = vmul.f32 %v1048, 0.5
    %v1312 = vmul.f32 %v603, 0.5
    %v1313 = vmul.f32 %v605, 0.5
    %v1314 = vmul.f32 %v1052, 0.5
    %v1315 = vmul.f32 %v1054, 0.5
    %v1316 = vmul.f32 %v609, 0.5
    %v1317 = vmul.f32 %v611, 0.5
    %v1318 = vmul.f32 %v1058, 0.5
    %v1319 = vmul.f32 %v1060, 0.5
    %v1320 = vmul.f32 %v615, 0.5
    %v1321 = vmul.f32 %v617, 0.5
    %v1322 = vmul.f32 %v1064, 0.5
    %v1323 = vmul.f32 %v1066, 0.5
    %v1324 = vtanh.pop %v1068
    %v1325 = vtanh.pop %v1069
    %v1326 = vtanh.pop %v1070
    %v1327 = vtanh.pop %v1071
    %v1328 = vtanh.pop %v1072
    %v1329 = vtanh.pop %v1073
    %v1330 = vtanh.pop %v1074
    %v1331 = vtanh.pop %v1075
    %v1332 = vtanh.pop %v1076
    %v1333 = vtanh.pop %v1077
    %v1334 = vtanh.pop %v1078
    %v1335 = vtanh.pop %v1079
    %v1336 = vtanh.pop %v1080
    %v1337 = vtanh.pop %v1081
    %v1338 = vtanh.pop %v1082
    %v1339 = vtanh.pop %v1083
    %v1340 = vtanh.pop %v1084
    %v1341 = vtanh.pop %v1085
    %v1342 = vtanh.pop %v1086
    %v1343 = vtanh.pop %v1087
    %v1344 = vtanh.pop %v1088
    %v1345 = vtanh.pop %v1089
    %v1346 = vtanh.pop %v1090
    %v1347 = vtanh.pop %v1091
    %v1348 = vtanh.pop %v1092
    %v1349 = vtanh.pop %v1093
    %v1350 = vtanh.pop %v1094
    %v1351 = vtanh.pop %v1095
    %v1352 = vtanh.pop %v1096
    %v1353 = vtanh.pop %v1097
    %v1354 = vtanh.pop %v1098
    %v1355 = vtanh.pop %v1099
    %v1356 = vtanh.pop %v1100
    %v1357 = vtanh.pop %v1101
    %v1358 = vtanh.pop %v1102
    %v1359 = vtanh.pop %v1103
    %v1360 = vtanh.pop %v1104
    %v1361 = vtanh.pop %v1105
    %v1362 = vtanh.pop %v1106
    %v1363 = vtanh.pop %v1107
    %v1364 = vtanh.pop %v1108
    %v1365 = vtanh.pop %v1109
    %v1366 = vtanh.pop %v1110
    %v1367 = vtanh.pop %v1111
    %v1368 = vtanh.pop %v1112
    %v1369 = vtanh.pop %v1113
    %v1370 = vtanh.pop %v1114
    %v1371 = vtanh.pop %v1115
    %v1372 = vtanh.pop %v1116
    %v1373 = vtanh.pop %v1117
    %v1374 = vtanh.pop %v1118
    %v1375 = vtanh.pop %v1119
    %v1376 = vtanh.pop %v1120
    %v1377 = vtanh.pop %v1121
    %v1378 = vtanh.pop %v1122
    %v1379 = vtanh.pop %v1123
    %v1380 = vtanh.pop %v1124
    %v1381 = vtanh.pop %v1125
    %v1382 = vtanh.pop %v1126
    %v1383 = vtanh.pop %v1127
    %v1384 = vtanh.pop %v1128
    %v1385 = vtanh.pop %v1129
    %v1386 = vtanh.pop %v1130
    %v1387 = vtanh.pop %v1131
    %v1388 = vtanh.pop %v1132
    %v1389 = vtanh.pop %v1133
    %v1390 = vtanh.pop %v1134
    %v1391 = vtanh.pop %v1135
    %v1392 = vtanh.pop %v1136
    %v1393 = vtanh.pop %v1137
    %v1394 = vtanh.pop %v1138
    %v1395 = vtanh.pop %v1139
    %v1396 = vtanh.pop %v1140
    %v1397 = vtanh.pop %v1141
    %v1398 = vtanh.pop %v1142
    %v1399 = vtanh.pop %v1143
    %v1400 = vtanh.pop %v1144
    %v1401 = vtanh.pop %v1145
    %v1402 = vtanh.pop %v1146
    %v1403 = vtanh.pop %v1147
    %v1404 = vtanh.pop %v1148
    %v1405 = vtanh.pop %v1149
    %v1406 = vtanh.pop %v1150
    %v1407 = vtanh.pop %v1151
    %v1408 = vtanh.pop %v1152
    %v1409 = vtanh.pop %v1153
    %v1410 = vtanh.pop %v1154
    %v1411 = vtanh.pop %v1155
    %v1412 = vtanh.pop %v1156
    %v1413 = vtanh.pop %v1157
    %v1414 = vtanh.pop %v1158
    %v1415 = vtanh.pop %v1159
    %v1416 = vtanh.pop %v1160
    %v1417 = vtanh.pop %v1161
    %v1418 = vtanh.pop %v1162
    %v1419 = vtanh.pop %v1163
    %v1420 = vtanh.pop %v1164
    %v1421 = vtanh.pop %v1165
    %v1422 = vtanh.pop %v1166
    %v1423 = vtanh.pop %v1167
    %v1424 = vtanh.pop %v1168
    %v1425 = vtanh.pop %v1169
    %v1426 = vtanh.pop %v1170
    %v1427 = vtanh.pop %v1171
    %v1428 = vtanh.pop %v1172
    %v1429 = vtanh.pop %v1173
    %v1430 = vtanh.pop %v1174
    %v1431 = vtanh.pop %v1175
    %v1432 = vtanh.pop %v1176
    %v1433 = vtanh.pop %v1177
    %v1434 = vtanh.pop %v1178
    %v1435 = vtanh.pop %v1179
    %v1436 = vtanh.pop %v1180
    %v1437 = vtanh.pop %v1181
    %v1438 = vtanh.pop %v1182
    %v1439 = vtanh.pop %v1183
    %v1440 = vtanh.pop %v1184
    %v1441 = vtanh.pop %v1185
    %v1442 = vtanh.pop %v1186
    %v1443 = vtanh.pop %v1187
    %v1444 = vtanh.pop %v1188
    %v1445 = vtanh.pop %v1189
    %v1446 = vtanh.pop %v1190
    %v1447 = vtanh.pop %v1191
    %v1448 = vtanh.pop %v1192
    %v1449 = vtanh.pop %v1193
    %v1450 = vtanh.pop %v1194
    %v1451 = vtanh.pop %v1195
    %v1452 = vtanh.pop %v1196
    %v1453 = vtanh.pop %v1197
    %v1454 = vtanh.pop %v1198
    %v1455 = vtanh.pop %v1199
    %v1456 = vtanh.pop %v1200
    %v1457 = vtanh.pop %v1201
    %v1458 = vtanh.pop %v1202
    %v1459 = vtanh.pop %v1203
    %v1460 = vtanh.pop %v1204
    %v1461 = vtanh.pop %v1205
    %v1462 = vtanh.pop %v1206
    %v1463 = vtanh.pop %v1207
    %v1464 = vtanh.pop %v1208
    %v1465 = vtanh.pop %v1209
    %v1466 = vtanh.pop %v1210
    %v1467 = vtanh.pop %v1211
    %v1468 = vtanh.pop %v1212
    %v1469 = vtanh.pop %v1213
    %v1470 = vtanh.pop %v1214
    %v1471 = vtanh.pop %v1215
    %v1472 = vtanh.pop %v1216
    %v1473 = vtanh.pop %v1217
    %v1474 = vtanh.pop %v1218
    %v1475 = vtanh.pop %v1219
    %v1476 = vtanh.pop %v1220
    %v1477 = vtanh.pop %v1221
    %v1478 = vtanh.pop %v1222
    %v1479 = vtanh.pop %v1223
    %v1480 = vtanh.pop %v1224
    %v1481 = vtanh.pop %v1225
    %v1482 = vtanh.pop %v1226
    %v1483 = vtanh.pop %v1227
    %v1484 = vtanh.pop %v1228
    %v1485 = vtanh.pop %v1229
    %v1486 = vtanh.pop %v1230
    %v1487 = vtanh.pop %v1231
    %v1488 = vtanh.pop %v1232
    %v1489 = vtanh.pop %v1233
    %v1490 = vtanh.pop %v1234
    %v1491 = vtanh.pop %v1235
    %v1492 = vtanh.pop %v1236
    %v1493 = vtanh.pop %v1237
    %v1494 = vtanh.pop %v1238
    %v1495 = vtanh.pop %v1239
    %v1496 = vtanh.pop %v1240
    %v1497 = vtanh.pop %v1241
    %v1498 = vtanh.pop %v1242
    %v1499 = vtanh.pop %v1243
    %v1500 = vtanh.pop %v1244
    %v1501 = vtanh.pop %v1245
    %v1502 = vtanh.pop %v1246
    %v1503 = vtanh.pop %v1247
    %v1504 = vtanh.pop %v1248
    %v1505 = vtanh.pop %v1249
    %v1506 = vtanh.pop %v1250
    %v1507 = vtanh.pop %v1251
    %v1508 = vtanh.pop %v1252
    %v1509 = vtanh.pop %v1253
    %v1510 = vtanh.pop %v1254
    %v1511 = vtanh.pop %v1255
    %v1512 = vtanh.pop %v1256
    %v1513 = vtanh.pop %v1257
    %v1514 = vtanh.pop %v1258
    %v1515 = vtanh.pop %v1259
    %v1516 = vtanh.pop %v1260
    %v1517 = vtanh.pop %v1261
    %v1518 = vtanh.pop %v1262
    %v1519 = vtanh.pop %v1263
    %v1520 = vtanh.pop %v1264
    %v1521 = vtanh.pop %v1265
    %v1522 = vtanh.pop %v1266
    %v1523 = vtanh.pop %v1267
    %v1524 = vtanh.pop %v1268
    %v1525 = vtanh.pop %v1269
    %v1526 = vtanh.pop %v1270
    %v1527 = vtanh.pop %v1271
    %v1528 = vtanh.pop %v1272
    %v1529 = vtanh.pop %v1273
    %v1530 = vtanh.pop %v1274
    %v1531 = vtanh.pop %v1275
    %v1532 = vtanh.pop %v1276
    %v1533 = vtanh.pop %v1277
    %v1534 = vtanh.pop %v1278
    %v1535 = vtanh.pop %v1279
    %v1536 = vtanh.pop %v1280
    %v1537 = vtanh.pop %v1281
    %v1538 = vtanh.pop %v1282
    %v1539 = vtanh.pop %v1283
    %v1540 = vtanh.pop %v1284
    %v1541 = vtanh.pop %v1285
    %v1542 = vtanh.pop %v1286
    %v1543 = vtanh.pop %v1287
    %v1544 = vtanh.pop %v1288
    %v1545 = vtanh.pop %v1289
    %v1546 = vtanh.pop %v1290
    %v1547 = vtanh.pop %v1291
    %v1548 = vtanh.pop %v1292
    %v1549 = vtanh.pop %v1293
    %v1550 = vtanh.pop %v1294
    %v1551 = vtanh.pop %v1295
    %v1552 = vtanh.pop %v1296
    %v1553 = vtanh.pop %v1297
    %v1554 = vtanh.pop %v1298
    %v1555 = vtanh.pop %v1299
    %v1556 = vtanh.pop %v1300
    %v1557 = vtanh.pop %v1301
    %v1558 = vtanh.pop %v1302
    %v1559 = vtanh.pop %v1303
    %v1560 = vtanh.pop %v1304
    %v1561 = vtanh.pop %v1305
    %v1562 = vtanh.pop %v1306
    %v1563 = vtanh.pop %v1307
    %v1564 = vtanh.pop %v1308
    %v1565 = vtanh.pop %v1309
    %v1566 = vtanh.pop %v1310
    %v1567 = vtanh.pop %v1311
    %v1568 = vtanh.pop %v1312
    %v1569 = vtanh.pop %v1313
    %v1570 = vtanh.pop %v1314
    %v1571 = vtanh.pop %v1315
    %v1572 = vtanh.pop %v1316
    %v1573 = vtanh.pop %v1317
    %v1574 = vtanh.pop %v1318
    %v1575 = vtanh.pop %v1319
    %v1576 = vtanh.pop %v1320
    %v1577 = vtanh.pop %v1321
    %v1578 = vtanh.pop %v1322
    %v1579 = vtanh.pop %v1323
    %v1580 = vmul.f32 %v1324, 0.5
    %v1581 = vmul.f32 %v1325, 0.5
    %v1582 = vmul.f32 %v1326, 0.5
    %v1583 = vmul.f32 %v1327, 0.5
    %v1584 = vmul.f32 %v1328, 0.5
    %v1585 = vmul.f32 %v1329, 0.5
    %v1586 = vmul.f32 %v1330, 0.5
    %v1587 = vmul.f32 %v1331, 0.5
    %v1588 = vmul.f32 %v1332, 0.5
    %v1589 = vmul.f32 %v1333, 0.5
    %v1590 = vmul.f32 %v1334, 0.5
    %v1591 = vmul.f32 %v1335, 0.5
    %v1592 = vmul.f32 %v1336, 0.5
    %v1593 = vmul.f32 %v1337, 0.5
    %v1594 = vmul.f32 %v1338, 0.5
    %v1595 = vmul.f32 %v1339, 0.5
    %v1596 = vmul.f32 %v1340, 0.5
    %v1597 = vmul.f32 %v1341, 0.5
    %v1598 = vmul.f32 %v1342, 0.5
    %v1599 = vmul.f32 %v1343, 0.5
    %v1600 = vmul.f32 %v1344, 0.5
    %v1601 = vmul.f32 %v1345, 0.5
    %v1602 = vmul.f32 %v1346, 0.5
    %v1603 = vmul.f32 %v1347, 0.5
    %v1604 = vmul.f32 %v1348, 0.5
    %v1605 = vmul.f32 %v1349, 0.5
    %v1606 = vmul.f32 %v1350, 0.5
    %v1607 = vmul.f32 %v1351, 0.5
    %v1608 = vmul.f32 %v1352, 0.5
    %v1609 = vmul.f32 %v1353, 0.5
    %v1610 = vmul.f32 %v1354, 0.5
    %v1611 = vmul.f32 %v1355, 0.5
    %v1612 = vmul.f32 %v1356, 0.5
    %v1613 = vmul.f32 %v1357, 0.5
    %v1614 = vmul.f32 %v1358, 0.5
    %v1615 = vmul.f32 %v1359, 0.5
    %v1616 = vmul.f32 %v1360, 0.5
    %v1617 = vmul.f32 %v1361, 0.5
    %v1618 = vmul.f32 %v1362, 0.5
    %v1619 = vmul.f32 %v1363, 0.5
    %v1620 = vmul.f32 %v1364, 0.5
    %v1621 = vmul.f32 %v1365, 0.5
    %v1622 = vmul.f32 %v1366, 0.5
    %v1623 = vmul.f32 %v1367, 0.5
    %v1624 = vmul.f32 %v1368, 0.5
    %v1625 = vmul.f32 %v1369, 0.5
    %v1626 = vmul.f32 %v1370, 0.5
    %v1627 = vmul.f32 %v1371, 0.5
    %v1628 = vmul.f32 %v1372, 0.5
    %v1629 = vmul.f32 %v1373, 0.5
    %v1630 = vmul.f32 %v1374, 0.5
    %v1631 = vmul.f32 %v1375, 0.5
    %v1632 = vmul.f32 %v1376, 0.5
    %v1633 = vmul.f32 %v1377, 0.5
    %v1634 = vmul.f32 %v1378, 0.5
    %v1635 = vmul.f32 %v1379, 0.5
    %v1636 = vmul.f32 %v1380, 0.5
    %v1637 = vmul.f32 %v1381, 0.5
    %v1638 = vmul.f32 %v1382, 0.5
    %v1639 = vmul.f32 %v1383, 0.5
    %v1640 = vmul.f32 %v1384, 0.5
    %v1641 = vmul.f32 %v1385, 0.5
    %v1642 = vmul.f32 %v1386, 0.5
    %v1643 = vmul.f32 %v1387, 0.5
    %v1644 = vmul.f32 %v1388, 0.5
    %v1645 = vmul.f32 %v1389, 0.5
    %v1646 = vmul.f32 %v1390, 0.5
    %v1647 = vmul.f32 %v1391, 0.5
    %v1648 = vmul.f32 %v1392, 0.5
    %v1649 = vmul.f32 %v1393, 0.5
    %v1650 = vmul.f32 %v1394, 0.5
    %v1651 = vmul.f32 %v1395, 0.5
    %v1652 = vmul.f32 %v1396, 0.5
    %v1653 = vmul.f32 %v1397, 0.5
    %v1654 = vmul.f32 %v1398, 0.5
    %v1655 = vmul.f32 %v1399, 0.5
    %v1656 = vmul.f32 %v1400, 0.5
    %v1657 = vmul.f32 %v1401, 0.5
    %v1658 = vmul.f32 %v1402, 0.5
    %v1659 = vmul.f32 %v1403, 0.5
    %v1660 = vmul.f32 %v1404, 0.5
    %v1661 = vmul.f32 %v1405, 0.5
    %v1662 = vmul.f32 %v1406, 0.5
    %v1663 = vmul.f32 %v1407, 0.5
    %v1664 = vmul.f32 %v1408, 0.5
    %v1665 = vmul.f32 %v1409, 0.5
    %v1666 = vmul.f32 %v1410, 0.5
    %v1667 = vmul.f32 %v1411, 0.5
    %v1668 = vmul.f32 %v1412, 0.5
    %v1669 = vmul.f32 %v1413, 0.5
    %v1670 = vmul.f32 %v1414, 0.5
    %v1671 = vmul.f32 %v1415, 0.5
    %v1672 = vmul.f32 %v1416, 0.5
    %v1673 = vmul.f32 %v1417, 0.5
    %v1674 = vmul.f32 %v1418, 0.5
    %v1675 = vmul.f32 %v1419, 0.5
    %v1676 = vmul.f32 %v1420, 0.5
    %v1677 = vmul.f32 %v1421, 0.5
    %v1678 = vmul.f32 %v1422, 0.5
    %v1679 = vmul.f32 %v1423, 0.5
    %v1680 = vmul.f32 %v1424, 0.5
    %v1681 = vmul.f32 %v1425, 0.5
    %v1682 = vmul.f32 %v1426, 0.5
    %v1683 = vmul.f32 %v1427, 0.5
    %v1684 = vmul.f32 %v1428, 0.5
    %v1685 = vmul.f32 %v1429, 0.5
    %v1686 = vmul.f32 %v1430, 0.5
    %v1687 = vmul.f32 %v1431, 0.5
    %v1688 = vmul.f32 %v1432, 0.5
    %v1689 = vmul.f32 %v1433, 0.5
    %v1690 = vmul.f32 %v1434, 0.5
    %v1691 = vmul.f32 %v1435, 0.5
    %v1692 = vmul.f32 %v1436, 0.5
    %v1693 = vmul.f32 %v1437, 0.5
    %v1694 = vmul.f32 %v1438, 0.5
    %v1695 = vmul.f32 %v1439, 0.5
    %v1696 = vmul.f32 %v1440, 0.5
    %v1697 = vmul.f32 %v1441, 0.5
    %v1698 = vmul.f32 %v1442, 0.5
    %v1699 = vmul.f32 %v1443, 0.5
    %v1700 = vmul.f32 %v1444, 0.5
    %v1701 = vmul.f32 %v1445, 0.5
    %v1702 = vmul.f32 %v1446, 0.5
    %v1703 = vmul.f32 %v1447, 0.5
    %v1704 = vmul.f32 %v1448, 0.5
    %v1705 = vmul.f32 %v1449, 0.5
    %v1706 = vmul.f32 %v1450, 0.5
    %v1707 = vmul.f32 %v1451, 0.5
    %v1708 = vmul.f32 %v1452, 0.5
    %v1709 = vmul.f32 %v1453, 0.5
    %v1710 = vmul.f32 %v1454, 0.5
    %v1711 = vmul.f32 %v1455, 0.5
    %v1712 = vmul.f32 %v1456, 0.5
    %v1713 = vmul.f32 %v1457, 0.5
    %v1714 = vmul.f32 %v1458, 0.5
    %v1715 = vmul.f32 %v1459, 0.5
    %v1716 = vmul.f32 %v1460, 0.5
    %v1717 = vmul.f32 %v1461, 0.5
    %v1718 = vmul.f32 %v1462, 0.5
    %v1719 = vmul.f32 %v1463, 0.5
    %v1720 = vmul.f32 %v1464, 0.5
    %v1721 = vmul.f32 %v1465, 0.5
    %v1722 = vmul.f32 %v1466, 0.5
    %v1723 = vmul.f32 %v1467, 0.5
    %v1724 = vmul.f32 %v1468, 0.5
    %v1725 = vmul.f32 %v1469, 0.5
    %v1726 = vmul.f32 %v1470, 0.5
    %v1727 = vmul.f32 %v1471, 0.5
    %v1728 = vmul.f32 %v1472, 0.5
    %v1729 = vmul.f32 %v1473, 0.5
    %v1730 = vmul.f32 %v1474, 0.5
    %v1731 = vmul.f32 %v1475, 0.5
    %v1732 = vmul.f32 %v1476, 0.5
    %v1733 = vmul.f32 %v1477, 0.5
    %v1734 = vmul.f32 %v1478, 0.5
    %v1735 = vmul.f32 %v1479, 0.5
    %v1736 = vmul.f32 %v1480, 0.5
    %v1737 = vmul.f32 %v1481, 0.5
    %v1738 = vmul.f32 %v1482, 0.5
    %v1739 = vmul.f32 %v1483, 0.5
    %v1740 = vmul.f32 %v1484, 0.5
    %v1741 = vmul.f32 %v1485, 0.5
    %v1742 = vmul.f32 %v1486, 0.5
    %v1743 = vmul.f32 %v1487, 0.5
    %v1744 = vmul.f32 %v1488, 0.5
    %v1745 = vmul.f32 %v1489, 0.5
    %v1746 = vmul.f32 %v1490, 0.5
    %v1747 = vmul.f32 %v1491, 0.5
    %v1748 = vmul.f32 %v1492, 0.5
    %v1749 = vmul.f32 %v1493, 0.5
    %v1750 = vmul.f32 %v1494, 0.5
    %v1751 = vmul.f32 %v1495, 0.5
    %v1752 = vmul.f32 %v1496, 0.5
    %v1753 = vmul.f32 %v1497, 0.5
    %v1754 = vmul.f32 %v1498, 0.5
    %v1755 = vmul.f32 %v1499, 0.5
    %v1756 = vmul.f32 %v1500, 0.5
    %v1757 = vmul.f32 %v1501, 0.5
    %v1758 = vmul.f32 %v1502, 0.5
    %v1759 = vmul.f32 %v1503, 0.5
    %v1760 = vmul.f32 %v1504, 0.5
    %v1761 = vmul.f32 %v1505, 0.5
    %v1762 = vmul.f32 %v1506, 0.5
    %v1763 = vmul.f32 %v1507, 0.5
    %v1764 = vmul.f32 %v1508, 0.5
    %v1765 = vmul.f32 %v1509, 0.5
    %v1766 = vmul.f32 %v1510, 0.5
    %v1767 = vmul.f32 %v1511, 0.5
    %v1768 = vmul.f32 %v1512, 0.5
    %v1769 = vmul.f32 %v1513, 0.5
    %v1770 = vmul.f32 %v1514, 0.5
    %v1771 = vmul.f32 %v1515, 0.5
    %v1772 = vmul.f32 %v1516, 0.5
    %v1773 = vmul.f32 %v1517, 0.5
    %v1774 = vmul.f32 %v1518, 0.5
    %v1775 = vmul.f32 %v1519, 0.5
    %v1776 = vmul.f32 %v1520, 0.5
    %v1777 = vmul.f32 %v1521, 0.5
    %v1778 = vmul.f32 %v1522, 0.5
    %v1779 = vmul.f32 %v1523, 0.5
    %v1780 = vmul.f32 %v1524, 0.5
    %v1781 = vmul.f32 %v1525, 0.5
    %v1782 = vmul.f32 %v1526, 0.5
    %v1783 = vmul.f32 %v1527, 0.5
    %v1784 = vmul.f32 %v1528, 0.5
    %v1785 = vmul.f32 %v1529, 0.5
    %v1786 = vmul.f32 %v1530, 0.5
    %v1787 = vmul.f32 %v1531, 0.5
    %v1788 = vmul.f32 %v1532, 0.5
    %v1789 = vmul.f32 %v1533, 0.5
    %v1790 = vmul.f32 %v1534, 0.5
    %v1791 = vmul.f32 %v1535, 0.5
    %v1792 = vmul.f32 %v1536, 0.5
    %v1793 = vmul.f32 %v1537, 0.5
    %v1794 = vmul.f32 %v1538, 0.5
    %v1795 = vmul.f32 %v1539, 0.5
    %v1796 = vmul.f32 %v1540, 0.5
    %v1797 = vmul.f32 %v1541, 0.5
    %v1798 = vmul.f32 %v1542, 0.5
    %v1799 = vmul.f32 %v1543, 0.5
    %v1800 = vmul.f32 %v1544, 0.5
    %v1801 = vmul.f32 %v1545, 0.5
    %v1802 = vmul.f32 %v1546, 0.5
    %v1803 = vmul.f32 %v1547, 0.5
    %v1804 = vmul.f32 %v1548, 0.5
    %v1805 = vmul.f32 %v1549, 0.5
    %v1806 = vmul.f32 %v1550, 0.5
    %v1807 = vmul.f32 %v1551, 0.5
    %v1808 = vmul.f32 %v1552, 0.5
    %v1809 = vmul.f32 %v1553, 0.5
    %v1810 = vmul.f32 %v1554, 0.5
    %v1811 = vmul.f32 %v1555, 0.5
    %v1812 = vmul.f32 %v1556, 0.5
    %v1813 = vmul.f32 %v1557, 0.5
    %v1814 = vmul.f32 %v1558, 0.5
    %v1815 = vmul.f32 %v1559, 0.5
    %v1816 = vmul.f32 %v1560, 0.5
    %v1817 = vmul.f32 %v1561, 0.5
    %v1818 = vmul.f32 %v1562, 0.5
    %v1819 = vmul.f32 %v1563, 0.5
    %v1820 = vmul.f32 %v1564, 0.5
    %v1821 = vmul.f32 %v1565, 0.5
    %v1822 = vmul.f32 %v1566, 0.5
    %v1823 = vmul.f32 %v1567, 0.5
    %v1824 = vmul.f32 %v1568, 0.5
    %v1825 = vmul.f32 %v1569, 0.5
    %v1826 = vmul.f32 %v1570, 0.5
    %v1827 = vmul.f32 %v1571, 0.5
    %v1828 = vmul.f32 %v1572, 0.5
    %v1829 = vmul.f32 %v1573, 0.5
    %v1830 = vmul.f32 %v1574, 0.5
    %v1831 = vmul.f32 %v1575, 0.5
    %v1832 = vmul.f32 %v1576, 0.5
    %v1833 = vmul.f32 %v1577, 0.5
    %v1834 = vmul.f32 %v1578, 0.5
    %v1835 = vmul.f32 %v1579, 0.5
    %v1836 = vadd.f32 %v1580, 0.5
    %v1837 = vadd.f32 %v1581, 0.5
    %v1838 = vadd.f32 %v1582, 0.5
    %v1839 = vadd.f32 %v1583, 0.5
    %v1840 = vadd.f32 %v1584, 0.5
    %v1841 = vadd.f32 %v1585, 0.5
    %v1842 = vadd.f32 %v1586, 0.5
    %v1843 = vadd.f32 %v1587, 0.5
    %v1844 = vadd.f32 %v1588, 0.5
    %v1845 = vadd.f32 %v1589, 0.5
    %v1846 = vadd.f32 %v1590, 0.5
    %v1847 = vadd.f32 %v1591, 0.5
    %v1848 = vadd.f32 %v1592, 0.5
    %v1849 = vadd.f32 %v1593, 0.5
    %v1850 = vadd.f32 %v1594, 0.5
    %v1851 = vadd.f32 %v1595, 0.5
    %v1852 = vadd.f32 %v1596, 0.5
    %v1853 = vadd.f32 %v1597, 0.5
    %v1854 = vadd.f32 %v1598, 0.5
    %v1855 = vadd.f32 %v1599, 0.5
    %v1856 = vadd.f32 %v1600, 0.5
    %v1857 = vadd.f32 %v1601, 0.5
    %v1858 = vadd.f32 %v1602, 0.5
    %v1859 = vadd.f32 %v1603, 0.5
    %v1860 = vadd.f32 %v1604, 0.5
    %v1861 = vadd.f32 %v1605, 0.5
    %v1862 = vadd.f32 %v1606, 0.5
    %v1863 = vadd.f32 %v1607, 0.5
    %v1864 = vadd.f32 %v1608, 0.5
    %v1865 = vadd.f32 %v1609, 0.5
    %v1866 = vadd.f32 %v1610, 0.5
    %v1867 = vadd.f32 %v1611, 0.5
    %v1868 = vadd.f32 %v1612, 0.5
    %v1869 = vadd.f32 %v1613, 0.5
    %v1870 = vadd.f32 %v1614, 0.5
    %v1871 = vadd.f32 %v1615, 0.5
    %v1872 = vadd.f32 %v1616, 0.5
    %v1873 = vadd.f32 %v1617, 0.5
    %v1874 = vadd.f32 %v1618, 0.5
    %v1875 = vadd.f32 %v1619, 0.5
    %v1876 = vadd.f32 %v1620, 0.5
    %v1877 = vadd.f32 %v1621, 0.5
    %v1878 = vadd.f32 %v1622, 0.5
    %v1879 = vadd.f32 %v1623, 0.5
    %v1880 = vadd.f32 %v1624, 0.5
    %v1881 = vadd.f32 %v1625, 0.5
    %v1882 = vadd.f32 %v1626, 0.5
    %v1883 = vadd.f32 %v1627, 0.5
    %v1884 = vadd.f32 %v1628, 0.5
    %v1885 = vadd.f32 %v1629, 0.5
    %v1886 = vadd.f32 %v1630, 0.5
    %v1887 = vadd.f32 %v1631, 0.5
    %v1888 = vadd.f32 %v1632, 0.5
    %v1889 = vadd.f32 %v1633, 0.5
    %v1890 = vadd.f32 %v1634, 0.5
    %v1891 = vadd.f32 %v1635, 0.5
    %v1892 = vadd.f32 %v1636, 0.5
    %v1893 = vadd.f32 %v1637, 0.5
    %v1894 = vadd.f32 %v1638, 0.5
    %v1895 = vadd.f32 %v1639, 0.5
    %v1896 = vadd.f32 %v1640, 0.5
    %v1897 = vadd.f32 %v1641, 0.5
    %v1898 = vadd.f32 %v1642, 0.5
    %v1899 = vadd.f32 %v1643, 0.5
    %v1900 = vadd.f32 %v1644, 0.5
    %v1901 = vadd.f32 %v1645, 0.5
    %v1902 = vadd.f32 %v1646, 0.5
    %v1903 = vadd.f32 %v1647, 0.5
    %v1904 = vadd.f32 %v1648, 0.5
    %v1905 = vadd.f32 %v1649, 0.5
    %v1906 = vadd.f32 %v1650, 0.5
    %v1907 = vadd.f32 %v1651, 0.5
    %v1908 = vadd.f32 %v1652, 0.5
    %v1909 = vadd.f32 %v1653, 0.5
    %v1910 = vadd.f32 %v1654, 0.5
    %v1911 = vadd.f32 %v1655, 0.5
    %v1912 = vadd.f32 %v1656, 0.5
    %v1913 = vadd.f32 %v1657, 0.5
    %v1914 = vadd.f32 %v1658, 0.5
    %v1915 = vadd.f32 %v1659, 0.5
    %v1916 = vadd.f32 %v1660, 0.5
    %v1917 = vadd.f32 %v1661, 0.5
    %v1918 = vadd.f32 %v1662, 0.5
    %v1919 = vadd.f32 %v1663, 0.5
    %v1920 = vadd.f32 %v1664, 0.5
    %v1921 = vadd.f32 %v1665, 0.5
    %v1922 = vadd.f32 %v1666, 0.5
    %v1923 = vadd.f32 %v1667, 0.5
    %v1924 = vadd.f32 %v1668, 0.5
    %v1925 = vadd.f32 %v1669, 0.5
    %v1926 = vadd.f32 %v1670, 0.5
    %v1927 = vadd.f32 %v1671, 0.5
    %v1928 = vadd.f32 %v1672, 0.5
    %v1929 = vadd.f32 %v1673, 0.5
    %v1930 = vadd.f32 %v1674, 0.5
    %v1931 = vadd.f32 %v1675, 0.5
    %v1932 = vadd.f32 %v1676, 0.5
    %v1933 = vadd.f32 %v1677, 0.5
    %v1934 = vadd.f32 %v1678, 0.5
    %v1935 = vadd.f32 %v1679, 0.5
    %v1936 = vadd.f32 %v1680, 0.5
    %v1937 = vadd.f32 %v1681, 0.5
    %v1938 = vadd.f32 %v1682, 0.5
    %v1939 = vadd.f32 %v1683, 0.5
    %v1940 = vadd.f32 %v1684, 0.5
    %v1941 = vadd.f32 %v1685, 0.5
    %v1942 = vadd.f32 %v1686, 0.5
    %v1943 = vadd.f32 %v1687, 0.5
    %v1944 = vadd.f32 %v1688, 0.5
    %v1945 = vadd.f32 %v1689, 0.5
    %v1946 = vadd.f32 %v1690, 0.5
    %v1947 = vadd.f32 %v1691, 0.5
    %v1948 = vadd.f32 %v1692, 0.5
    %v1949 = vadd.f32 %v1693, 0.5
    %v1950 = vadd.f32 %v1694, 0.5
    %v1951 = vadd.f32 %v1695, 0.5
    %v1952 = vadd.f32 %v1696, 0.5
    %v1953 = vadd.f32 %v1697, 0.5
    %v1954 = vadd.f32 %v1698, 0.5
    %v1955 = vadd.f32 %v1699, 0.5
    %v1956 = vadd.f32 %v1700, 0.5
    %v1957 = vadd.f32 %v1701, 0.5
    %v1958 = vadd.f32 %v1702, 0.5
    %v1959 = vadd.f32 %v1703, 0.5
    %v1960 = vadd.f32 %v1704, 0.5
    %v1961 = vadd.f32 %v1705, 0.5
    %v1962 = vadd.f32 %v1706, 0.5
    %v1963 = vadd.f32 %v1707, 0.5
    %v1964 = vadd.f32 %v1708, 0.5
    %v1965 = vadd.f32 %v1709, 0.5
    %v1966 = vadd.f32 %v1710, 0.5
    %v1967 = vadd.f32 %v1711, 0.5
    %v1968 = vadd.f32 %v1712, 0.5
    %v1969 = vadd.f32 %v1713, 0.5
    %v1970 = vadd.f32 %v1714, 0.5
    %v1971 = vadd.f32 %v1715, 0.5
    %v1972 = vadd.f32 %v1716, 0.5
    %v1973 = vadd.f32 %v1717, 0.5
    %v1974 = vadd.f32 %v1718, 0.5
    %v1975 = vadd.f32 %v1719, 0.5
    %v1976 = vadd.f32 %v1720, 0.5
    %v1977 = vadd.f32 %v1721, 0.5
    %v1978 = vadd.f32 %v1722, 0.5
    %v1979 = vadd.f32 %v1723, 0.5
    %v1980 = vadd.f32 %v1724, 0.5
    %v1981 = vadd.f32 %v1725, 0.5
    %v1982 = vadd.f32 %v1726, 0.5
    %v1983 = vadd.f32 %v1727, 0.5
    %v1984 = vadd.f32 %v1728, 0.5
    %v1985 = vadd.f32 %v1729, 0.5
    %v1986 = vadd.f32 %v1730, 0.5
    %v1987 = vadd.f32 %v1731, 0.5
    %v1988 = vadd.f32 %v1732, 0.5
    %v1989 = vadd.f32 %v1733, 0.5
    %v1990 = vadd.f32 %v1734, 0.5
    %v1991 = vadd.f32 %v1735, 0.5
    %v1992 = vadd.f32 %v1736, 0.5
    %v1993 = vadd.f32 %v1737, 0.5
    %v1994 = vadd.f32 %v1738, 0.5
    %v1995 = vadd.f32 %v1739, 0.5
    %v1996 = vadd.f32 %v1740, 0.5
    %v1997 = vadd.f32 %v1741, 0.5
    %v1998 = vadd.f32 %v1742, 0.5
    %v1999 = vadd.f32 %v1743, 0.5
    %v2000 = vadd.f32 %v1744, 0.5
    %v2001 = vadd.f32 %v1745, 0.5
    %v2002 = vadd.f32 %v1746, 0.5
    %v2003 = vadd.f32 %v1747, 0.5
    %v2004 = vadd.f32 %v1748, 0.5
    %v2005 = vadd.f32 %v1749, 0.5
    %v2006 = vadd.f32 %v1750, 0.5
    %v2007 = vadd.f32 %v1751, 0.5
    %v2008 = vadd.f32 %v1752, 0.5
    %v2009 = vadd.f32 %v1753, 0.5
    %v2010 = vadd.f32 %v1754, 0.5
    %v2011 = vadd.f32 %v1755, 0.5
    %v2012 = vadd.f32 %v1756, 0.5
    %v2013 = vadd.f32 %v1757, 0.5
    %v2014 = vadd.f32 %v1758, 0.5
    %v2015 = vadd.f32 %v1759, 0.5
    %v2016 = vadd.f32 %v1760, 0.5
    %v2017 = vadd.f32 %v1761, 0.5
    %v2018 = vadd.f32 %v1762, 0.5
    %v2019 = vadd.f32 %v1763, 0.5
    %v2020 = vadd.f32 %v1764, 0.5
    %v2021 = vadd.f32 %v1765, 0.5
    %v2022 = vadd.f32 %v1766, 0.5
    %v2023 = vadd.f32 %v1767, 0.5
    %v2024 = vadd.f32 %v1768, 0.5
    %v2025 = vadd.f32 %v1769, 0.5
    %v2026 = vadd.f32 %v1770, 0.5
    %v2027 = vadd.f32 %v1771, 0.5
    %v2028 = vadd.f32 %v1772, 0.5
    %v2029 = vadd.f32 %v1773, 0.5
    %v2030 = vadd.f32 %v1774, 0.5
    %v2031 = vadd.f32 %v1775, 0.5
    %v2032 = vadd.f32 %v1776, 0.5
    %v2033 = vadd.f32 %v1777, 0.5
    %v2034 = vadd.f32 %v1778, 0.5
    %v2035 = vadd.f32 %v1779, 0.5
    %v2036 = vadd.f32 %v1780, 0.5
    %v2037 = vadd.f32 %v1781, 0.5
    %v2038 = vadd.f32 %v1782, 0.5
    %v2039 = vadd.f32 %v1783, 0.5
    %v2040 = vadd.f32 %v1784, 0.5
    %v2041 = vadd.f32 %v1785, 0.5
    %v2042 = vadd.f32 %v1786, 0.5
    %v2043 = vadd.f32 %v1787, 0.5
    %v2044 = vadd.f32 %v1788, 0.5
    %v2045 = vadd.f32 %v1789, 0.5
    %v2046 = vadd.f32 %v1790, 0.5
    %v2047 = vadd.f32 %v1791, 0.5
    %v2048 = vadd.f32 %v1792, 0.5
    %v2049 = vadd.f32 %v1793, 0.5
    %v2050 = vadd.f32 %v1794, 0.5
    %v2051 = vadd.f32 %v1795, 0.5
    %v2052 = vadd.f32 %v1796, 0.5
    %v2053 = vadd.f32 %v1797, 0.5
    %v2054 = vadd.f32 %v1798, 0.5
    %v2055 = vadd.f32 %v1799, 0.5
    %v2056 = vadd.f32 %v1800, 0.5
    %v2057 = vadd.f32 %v1801, 0.5
    %v2058 = vadd.f32 %v1802, 0.5
    %v2059 = vadd.f32 %v1803, 0.5
    %v2060 = vadd.f32 %v1804, 0.5
    %v2061 = vadd.f32 %v1805, 0.5
    %v2062 = vadd.f32 %v1806, 0.5
    %v2063 = vadd.f32 %v1807, 0.5
    %v2064 = vadd.f32 %v1808, 0.5
    %v2065 = vadd.f32 %v1809, 0.5
    %v2066 = vadd.f32 %v1810, 0.5
    %v2067 = vadd.f32 %v1811, 0.5
    %v2068 = vadd.f32 %v1812, 0.5
    %v2069 = vadd.f32 %v1813, 0.5
    %v2070 = vadd.f32 %v1814, 0.5
    %v2071 = vadd.f32 %v1815, 0.5
    %v2072 = vadd.f32 %v1816, 0.5
    %v2073 = vadd.f32 %v1817, 0.5
    %v2074 = vadd.f32 %v1818, 0.5
    %v2075 = vadd.f32 %v1819, 0.5
    %v2076 = vadd.f32 %v1820, 0.5
    %v2077 = vadd.f32 %v1821, 0.5
    %v2078 = vadd.f32 %v1822, 0.5
    %v2079 = vadd.f32 %v1823, 0.5
    %v2080 = vadd.f32 %v1824, 0.5
    %v2081 = vadd.f32 %v1825, 0.5
    %v2082 = vadd.f32 %v1826, 0.5
    %v2083 = vadd.f32 %v1827, 0.5
    %v2084 = vadd.f32 %v1828, 0.5
    %v2085 = vadd.f32 %v1829, 0.5
    %v2086 = vadd.f32 %v1830, 0.5
    %v2087 = vadd.f32 %v1831, 0.5
    %v2088 = vadd.f32 %v1832, 0.5
    %v2089 = vadd.f32 %v1833, 0.5
    %v2090 = vadd.f32 %v1834, 0.5
    %v2091 = vadd.f32 %v1835, 0.5
    %2092 = vst [vmem:[#allocation7] sm:$0xff] %v1836
    %2093 = vst [vmem:[#allocation7 + $0x8] sm:$0xff] %v1837
    %2094 = vst [vmem:[#allocation7 + $0x10] sm:$0xff] %v1838
    %2095 = vst [vmem:[#allocation7 + $0x18] sm:$0xff] %v1839
    %2096 = vst [vmem:[#allocation7 + $0x20] sm:$0xff] %v1840
    %2097 = vst [vmem:[#allocation7 + $0x28] sm:$0xff] %v1841
    %2098 = vst [vmem:[#allocation7 + $0x30] sm:$0xff] %v1842
    %2099 = vst [vmem:[#allocation7 + $0x38] sm:$0xff] %v1843
    %2100 = vst [vmem:[#allocation7 + $0x40] sm:$0xff] %v1844
    %2101 = vst [vmem:[#allocation7 + $0x48] sm:$0xff] %v1845
    %2102 = vst [vmem:[#allocation7 + $0x50] sm:$0xff] %v1846
    %2103 = vst [vmem:[#allocation7 + $0x58] sm:$0xff] %v1847
    %2104 = vst [vmem:[#allocation7 + $0x60] sm:$0xff] %v1848
    %2105 = vst [vmem:[#allocation7 + $0x68] sm:$0xff] %v1849
    %2106 = vst [vmem:[#allocation7 + $0x70] sm:$0xff] %v1850
    %2107 = vst [vmem:[#allocation7 + $0x78] sm:$0xff] %v1851
    %2108 = vst [vmem:[#allocation7 + $0x80] sm:$0xff] %v1852
    %2109 = vst [vmem:[#allocation7 + $0x88] sm:$0xff] %v1853
    %2110 = vst [vmem:[#allocation7 + $0x90] sm:$0xff] %v1854
    %2111 = vst [vmem:[#allocation7 + $0x98] sm:$0xff] %v1855
    %2112 = vst [vmem:[#allocation7 + $0xa0] sm:$0xff] %v1856
    %2113 = vst [vmem:[#allocation7 + $0xa8] sm:$0xff] %v1857
    %2114 = vst [vmem:[#allocation7 + $0xb0] sm:$0xff] %v1858
    %2115 = vst [vmem:[#allocation7 + $0xb8] sm:$0xff] %v1859
    %2116 = vst [vmem:[#allocation7 + $0xc0] sm:$0xff] %v1860
    %2117 = vst [vmem:[#allocation7 + $0xc8] sm:$0xff] %v1861
    %2118 = vst [vmem:[#allocation7 + $0xd0] sm:$0xff] %v1862
    %2119 = vst [vmem:[#allocation7 + $0xd8] sm:$0xff] %v1863
    %2120 = vst [vmem:[#allocation7 + $0xe0] sm:$0xff] %v1864
    %2121 = vst [vmem:[#allocation7 + $0xe8] sm:$0xff] %v1865
    %2122 = vst [vmem:[#allocation7 + $0xf0] sm:$0xff] %v1866
    %2123 = vst [vmem:[#allocation7 + $0xf8] sm:$0xff] %v1867
    %2124 = vst [vmem:[#allocation7 + $0x100] sm:$0xff] %v1868
    %2125 = vst [vmem:[#allocation7 + $0x108] sm:$0xff] %v1869
    %2126 = vst [vmem:[#allocation7 + $0x110] sm:$0xff] %v1870
    %2127 = vst [vmem:[#allocation7 + $0x118] sm:$0xff] %v1871
    %2128 = vst [vmem:[#allocation7 + $0x120] sm:$0xff] %v1872
    %2129 = vst [vmem:[#allocation7 + $0x128] sm:$0xff] %v1873
    %2130 = vst [vmem:[#allocation7 + $0x130] sm:$0xff] %v1874
    %2131 = vst [vmem:[#allocation7 + $0x138] sm:$0xff] %v1875
    %2132 = vst [vmem:[#allocation7 + $0x140] sm:$0xff] %v1876
    %2133 = vst [vmem:[#allocation7 + $0x148] sm:$0xff] %v1877
    %2134 = vst [vmem:[#allocation7 + $0x150] sm:$0xff] %v1878
    %2135 = vst [vmem:[#allocation7 + $0x158] sm:$0xff] %v1879
    %2136 = vst [vmem:[#allocation7 + $0x160] sm:$0xff] %v1880
    %2137 = vst [vmem:[#allocation7 + $0x168] sm:$0xff] %v1881
    %2138 = vst [vmem:[#allocation7 + $0x170] sm:$0xff] %v1882
    %2139 = vst [vmem:[#allocation7 + $0x178] sm:$0xff] %v1883
    %2140 = vst [vmem:[#allocation7 + $0x180] sm:$0xff] %v1884
    %2141 = vst [vmem:[#allocation7 + $0x188] sm:$0xff] %v1885
    %2142 = vst [vmem:[#allocation7 + $0x190] sm:$0xff] %v1886
    %2143 = vst [vmem:[#allocation7 + $0x198] sm:$0xff] %v1887
    %2144 = vst [vmem:[#allocation7 + $0x1a0] sm:$0xff] %v1888
    %2145 = vst [vmem:[#allocation7 + $0x1a8] sm:$0xff] %v1889
    %2146 = vst [vmem:[#allocation7 + $0x1b0] sm:$0xff] %v1890
    %2147 = vst [vmem:[#allocation7 + $0x1b8] sm:$0xff] %v1891
    %2148 = vst [vmem:[#allocation7 + $0x1c0] sm:$0xff] %v1892
    %2149 = vst [vmem:[#allocation7 + $0x1c8] sm:$0xff] %v1893
    %2150 = vst [vmem:[#allocation7 + $0x1d0] sm:$0xff] %v1894
    %2151 = vst [vmem:[#allocation7 + $0x1d8] sm:$0xff] %v1895
    %2152 = vst [vmem:[#allocation7 + $0x1e0] sm:$0xff] %v1896
    %2153 = vst [vmem:[#allocation7 + $0x1e8] sm:$0xff] %v1897
    %2154 = vst [vmem:[#allocation7 + $0x1f0] sm:$0xff] %v1898
    %2155 = vst [vmem:[#allocation7 + $0x1f8] sm:$0xff] %v1899
    %2156 = vst [vmem:[#allocation7 + $0x200] sm:$0xff] %v1900
    %2157 = vst [vmem:[#allocation7 + $0x208] sm:$0xff] %v1901
    %2158 = vst [vmem:[#allocation7 + $0x210] sm:$0xff] %v1902
    %2159 = vst [vmem:[#allocation7 + $0x218] sm:$0xff] %v1903
    %2160 = vst [vmem:[#allocation7 + $0x220] sm:$0xff] %v1904
    %2161 = vst [vmem:[#allocation7 + $0x228] sm:$0xff] %v1905
    %2162 = vst [vmem:[#allocation7 + $0x230] sm:$0xff] %v1906
    %2163 = vst [vmem:[#allocation7 + $0x238] sm:$0xff] %v1907
    %2164 = vst [vmem:[#allocation7 + $0x240] sm:$0xff] %v1908
    %2165 = vst [vmem:[#allocation7 + $0x248] sm:$0xff] %v1909
    %2166 = vst [vmem:[#allocation7 + $0x250] sm:$0xff] %v1910
    %2167 = vst [vmem:[#allocation7 + $0x258] sm:$0xff] %v1911
    %2168 = vst [vmem:[#allocation7 + $0x260] sm:$0xff] %v1912
    %2169 = vst [vmem:[#allocation7 + $0x268] sm:$0xff] %v1913
    %2170 = vst [vmem:[#allocation7 + $0x270] sm:$0xff] %v1914
    %2171 = vst [vmem:[#allocation7 + $0x278] sm:$0xff] %v1915
    %2172 = vst [vmem:[#allocation7 + $0x280] sm:$0xff] %v1916
    %2173 = vst [vmem:[#allocation7 + $0x288] sm:$0xff] %v1917
    %2174 = vst [vmem:[#allocation7 + $0x290] sm:$0xff] %v1918
    %2175 = vst [vmem:[#allocation7 + $0x298] sm:$0xff] %v1919
    %2176 = vst [vmem:[#allocation7 + $0x2a0] sm:$0xff] %v1920
    %2177 = vst [vmem:[#allocation7 + $0x2a8] sm:$0xff] %v1921
    %2178 = vst [vmem:[#allocation7 + $0x2b0] sm:$0xff] %v1922
    %2179 = vst [vmem:[#allocation7 + $0x2b8] sm:$0xff] %v1923
    %2180 = vst [vmem:[#allocation7 + $0x2c0] sm:$0xff] %v1924
    %2181 = vst [vmem:[#allocation7 + $0x2c8] sm:$0xff] %v1925
    %2182 = vst [vmem:[#allocation7 + $0x2d0] sm:$0xff] %v1926
    %2183 = vst [vmem:[#allocation7 + $0x2d8] sm:$0xff] %v1927
    %2184 = vst [vmem:[#allocation7 + $0x2e0] sm:$0xff] %v1928
    %2185 = vst [vmem:[#allocation7 + $0x2e8] sm:$0xff] %v1929
    %2186 = vst [vmem:[#allocation7 + $0x2f0] sm:$0xff] %v1930
    %2187 = vst [vmem:[#allocation7 + $0x2f8] sm:$0xff] %v1931
    %2188 = vst [vmem:[#allocation7 + $0x300] sm:$0xff] %v1932
    %2189 = vst [vmem:[#allocation7 + $0x308] sm:$0xff] %v1933
    %2190 = vst [vmem:[#allocation7 + $0x310] sm:$0xff] %v1934
    %2191 = vst [vmem:[#allocation7 + $0x318] sm:$0xff] %v1935
    %2192 = vst [vmem:[#allocation7 + $0x320] sm:$0xff] %v1936
    %2193 = vst [vmem:[#allocation7 + $0x328] sm:$0xff] %v1937
    %2194 = vst [vmem:[#allocation7 + $0x330] sm:$0xff] %v1938
    %2195 = vst [vmem:[#allocation7 + $0x338] sm:$0xff] %v1939
    %2196 = vst [vmem:[#allocation7 + $0x340] sm:$0xff] %v1940
    %2197 = vst [vmem:[#allocation7 + $0x348] sm:$0xff] %v1941
    %2198 = vst [vmem:[#allocation7 + $0x350] sm:$0xff] %v1942
    %2199 = vst [vmem:[#allocation7 + $0x358] sm:$0xff] %v1943
    %2200 = vst [vmem:[#allocation7 + $0x360] sm:$0xff] %v1944
    %2201 = vst [vmem:[#allocation7 + $0x368] sm:$0xff] %v1945
    %2202 = vst [vmem:[#allocation7 + $0x370] sm:$0xff] %v1946
    %2203 = vst [vmem:[#allocation7 + $0x378] sm:$0xff] %v1947
    %2204 = vst [vmem:[#allocation7 + $0x380] sm:$0xff] %v1948
    %2205 = vst [vmem:[#allocation7 + $0x388] sm:$0xff] %v1949
    %2206 = vst [vmem:[#allocation7 + $0x390] sm:$0xff] %v1950
    %2207 = vst [vmem:[#allocation7 + $0x398] sm:$0xff] %v1951
    %2208 = vst [vmem:[#allocation7 + $0x3a0] sm:$0xff] %v1952
    %2209 = vst [vmem:[#allocation7 + $0x3a8] sm:$0xff] %v1953
    %2210 = vst [vmem:[#allocation7 + $0x3b0] sm:$0xff] %v1954
    %2211 = vst [vmem:[#allocation7 + $0x3b8] sm:$0xff] %v1955
    %2212 = vst [vmem:[#allocation7 + $0x3c0] sm:$0xff] %v1956
    %2213 = vst [vmem:[#allocation7 + $0x3c8] sm:$0xff] %v1957
    %2214 = vst [vmem:[#allocation7 + $0x3d0] sm:$0xff] %v1958
    %2215 = vst [vmem:[#allocation7 + $0x3d8] sm:$0xff] %v1959
    %2216 = vst [vmem:[#allocation7 + $0x3e0] sm:$0xff] %v1960
    %2217 = vst [vmem:[#allocation7 + $0x3e8] sm:$0xff] %v1961
    %2218 = vst [vmem:[#allocation7 + $0x3f0] sm:$0xff] %v1962
    %2219 = vst [vmem:[#allocation7 + $0x3f8] sm:$0xff] %v1963
    %2220 = vst [vmem:[#allocation7 + $0x400] sm:$0xff] %v1964
    %2221 = vst [vmem:[#allocation7 + $0x408] sm:$0xff] %v1965
    %2222 = vst [vmem:[#allocation7 + $0x410] sm:$0xff] %v1966
    %2223 = vst [vmem:[#allocation7 + $0x418] sm:$0xff] %v1967
    %2224 = vst [vmem:[#allocation7 + $0x420] sm:$0xff] %v1968
    %2225 = vst [vmem:[#allocation7 + $0x428] sm:$0xff] %v1969
    %2226 = vst [vmem:[#allocation7 + $0x430] sm:$0xff] %v1970
    %2227 = vst [vmem:[#allocation7 + $0x438] sm:$0xff] %v1971
    %2228 = vst [vmem:[#allocation7 + $0x440] sm:$0xff] %v1972
    %2229 = vst [vmem:[#allocation7 + $0x448] sm:$0xff] %v1973
    %2230 = vst [vmem:[#allocation7 + $0x450] sm:$0xff] %v1974
    %2231 = vst [vmem:[#allocation7 + $0x458] sm:$0xff] %v1975
    %2232 = vst [vmem:[#allocation7 + $0x460] sm:$0xff] %v1976
    %2233 = vst [vmem:[#allocation7 + $0x468] sm:$0xff] %v1977
    %2234 = vst [vmem:[#allocation7 + $0x470] sm:$0xff] %v1978
    %2235 = vst [vmem:[#allocation7 + $0x478] sm:$0xff] %v1979
    %2236 = vst [vmem:[#allocation7 + $0x480] sm:$0xff] %v1980
    %2237 = vst [vmem:[#allocation7 + $0x488] sm:$0xff] %v1981
    %2238 = vst [vmem:[#allocation7 + $0x490] sm:$0xff] %v1982
    %2239 = vst [vmem:[#allocation7 + $0x498] sm:$0xff] %v1983
    %2240 = vst [vmem:[#allocation7 + $0x4a0] sm:$0xff] %v1984
    %2241 = vst [vmem:[#allocation7 + $0x4a8] sm:$0xff] %v1985
    %2242 = vst [vmem:[#allocation7 + $0x4b0] sm:$0xff] %v1986
    %2243 = vst [vmem:[#allocation7 + $0x4b8] sm:$0xff] %v1987
    %2244 = vst [vmem:[#allocation7 + $0x4c0] sm:$0xff] %v1988
    %2245 = vst [vmem:[#allocation7 + $0x4c8] sm:$0xff] %v1989
    %2246 = vst [vmem:[#allocation7 + $0x4d0] sm:$0xff] %v1990
    %2247 = vst [vmem:[#allocation7 + $0x4d8] sm:$0xff] %v1991
    %2248 = vst [vmem:[#allocation7 + $0x4e0] sm:$0xff] %v1992
    %2249 = vst [vmem:[#allocation7 + $0x4e8] sm:$0xff] %v1993
    %2250 = vst [vmem:[#allocation7 + $0x4f0] sm:$0xff] %v1994
    %2251 = vst [vmem:[#allocation7 + $0x4f8] sm:$0xff] %v1995
    %2252 = vst [vmem:[#allocation7 + $0x500] sm:$0xff] %v1996
    %2253 = vst [vmem:[#allocation7 + $0x508] sm:$0xff] %v1997
    %2254 = vst [vmem:[#allocation7 + $0x510] sm:$0xff] %v1998
    %2255 = vst [vmem:[#allocation7 + $0x518] sm:$0xff] %v1999
    %2256 = vst [vmem:[#allocation7 + $0x520] sm:$0xff] %v2000
    %2257 = vst [vmem:[#allocation7 + $0x528] sm:$0xff] %v2001
    %2258 = vst [vmem:[#allocation7 + $0x530] sm:$0xff] %v2002
    %2259 = vst [vmem:[#allocation7 + $0x538] sm:$0xff] %v2003
    %2260 = vst [vmem:[#allocation7 + $0x540] sm:$0xff] %v2004
    %2261 = vst [vmem:[#allocation7 + $0x548] sm:$0xff] %v2005
    %2262 = vst [vmem:[#allocation7 + $0x550] sm:$0xff] %v2006
    %2263 = vst [vmem:[#allocation7 + $0x558] sm:$0xff] %v2007
    %2264 = vst [vmem:[#allocation7 + $0x560] sm:$0xff] %v2008
    %2265 = vst [vmem:[#allocation7 + $0x568] sm:$0xff] %v2009
    %2266 = vst [vmem:[#allocation7 + $0x570] sm:$0xff] %v2010
    %2267 = vst [vmem:[#allocation7 + $0x578] sm:$0xff] %v2011
    %2268 = vst [vmem:[#allocation7 + $0x580] sm:$0xff] %v2012
    %2269 = vst [vmem:[#allocation7 + $0x588] sm:$0xff] %v2013
    %2270 = vst [vmem:[#allocation7 + $0x590] sm:$0xff] %v2014
    %2271 = vst [vmem:[#allocation7 + $0x598] sm:$0xff] %v2015
    %2272 = vst [vmem:[#allocation7 + $0x5a0] sm:$0xff] %v2016
    %2273 = vst [vmem:[#allocation7 + $0x5a8] sm:$0xff] %v2017
    %2274 = vst [vmem:[#allocation7 + $0x5b0] sm:$0xff] %v2018
    %2275 = vst [vmem:[#allocation7 + $0x5b8] sm:$0xff] %v2019
    %2276 = vst [vmem:[#allocation7 + $0x5c0] sm:$0xff] %v2020
    %2277 = vst [vmem:[#allocation7 + $0x5c8] sm:$0xff] %v2021
    %2278 = vst [vmem:[#allocation7 + $0x5d0] sm:$0xff] %v2022
    %2279 = vst [vmem:[#allocation7 + $0x5d8] sm:$0xff] %v2023
    %2280 = vst [vmem:[#allocation7 + $0x5e0] sm:$0xff] %v2024
    %2281 = vst [vmem:[#allocation7 + $0x5e8] sm:$0xff] %v2025
    %2282 = vst [vmem:[#allocation7 + $0x5f0] sm:$0xff] %v2026
    %2283 = vst [vmem:[#allocation7 + $0x5f8] sm:$0xff] %v2027
    %2284 = vst [vmem:[#allocation7 + $0x600] sm:$0xff] %v2028
    %2285 = vst [vmem:[#allocation7 + $0x608] sm:$0xff] %v2029
    %2286 = vst [vmem:[#allocation7 + $0x610] sm:$0xff] %v2030
    %2287 = vst [vmem:[#allocation7 + $0x618] sm:$0xff] %v2031
    %2288 = vst [vmem:[#allocation7 + $0x620] sm:$0xff] %v2032
    %2289 = vst [vmem:[#allocation7 + $0x628] sm:$0xff] %v2033
    %2290 = vst [vmem:[#allocation7 + $0x630] sm:$0xff] %v2034
    %2291 = vst [vmem:[#allocation7 + $0x638] sm:$0xff] %v2035
    %2292 = vst [vmem:[#allocation7 + $0x640] sm:$0xff] %v2036
    %2293 = vst [vmem:[#allocation7 + $0x648] sm:$0xff] %v2037
    %2294 = vst [vmem:[#allocation7 + $0x650] sm:$0xff] %v2038
    %2295 = vst [vmem:[#allocation7 + $0x658] sm:$0xff] %v2039
    %2296 = vst [vmem:[#allocation7 + $0x660] sm:$0xff] %v2040
    %2297 = vst [vmem:[#allocation7 + $0x668] sm:$0xff] %v2041
    %2298 = vst [vmem:[#allocation7 + $0x670] sm:$0xff] %v2042
    %2299 = vst [vmem:[#allocation7 + $0x678] sm:$0xff] %v2043
    %2300 = vst [vmem:[#allocation7 + $0x680] sm:$0xff] %v2044
    %2301 = vst [vmem:[#allocation7 + $0x688] sm:$0xff] %v2045
    %2302 = vst [vmem:[#allocation7 + $0x690] sm:$0xff] %v2046
    %2303 = vst [vmem:[#allocation7 + $0x698] sm:$0xff] %v2047
    %2304 = vst [vmem:[#allocation7 + $0x6a0] sm:$0xff] %v2048
    %2305 = vst [vmem:[#allocation7 + $0x6a8] sm:$0xff] %v2049
    %2306 = vst [vmem:[#allocation7 + $0x6b0] sm:$0xff] %v2050
    %2307 = vst [vmem:[#allocation7 + $0x6b8] sm:$0xff] %v2051
    %2308 = vst [vmem:[#allocation7 + $0x6c0] sm:$0xff] %v2052
    %2309 = vst [vmem:[#allocation7 + $0x6c8] sm:$0xff] %v2053
    %2310 = vst [vmem:[#allocation7 + $0x6d0] sm:$0xff] %v2054
    %2311 = vst [vmem:[#allocation7 + $0x6d8] sm:$0xff] %v2055
    %2312 = vst [vmem:[#allocation7 + $0x6e0] sm:$0xff] %v2056
    %2313 = vst [vmem:[#allocation7 + $0x6e8] sm:$0xff] %v2057
    %2314 = vst [vmem:[#allocation7 + $0x6f0] sm:$0xff] %v2058
    %2315 = vst [vmem:[#allocation7 + $0x6f8] sm:$0xff] %v2059
    %2316 = vst [vmem:[#allocation7 + $0x700] sm:$0xff] %v2060
    %2317 = vst [vmem:[#allocation7 + $0x708] sm:$0xff] %v2061
    %2318 = vst [vmem:[#allocation7 + $0x710] sm:$0xff] %v2062
    %2319 = vst [vmem:[#allocation7 + $0x718] sm:$0xff] %v2063
    %2320 = vst [vmem:[#allocation7 + $0x720] sm:$0xff] %v2064
    %2321 = vst [vmem:[#allocation7 + $0x728] sm:$0xff] %v2065
    %2322 = vst [vmem:[#allocation7 + $0x730] sm:$0xff] %v2066
    %2323 = vst [vmem:[#allocation7 + $0x738] sm:$0xff] %v2067
    %2324 = vst [vmem:[#allocation7 + $0x740] sm:$0xff] %v2068
    %2325 = vst [vmem:[#allocation7 + $0x748] sm:$0xff] %v2069
    %2326 = vst [vmem:[#allocation7 + $0x750] sm:$0xff] %v2070
    %2327 = vst [vmem:[#allocation7 + $0x758] sm:$0xff] %v2071
    %2328 = vst [vmem:[#allocation7 + $0x760] sm:$0xff] %v2072
    %2329 = vst [vmem:[#allocation7 + $0x768] sm:$0xff] %v2073
    %2330 = vst [vmem:[#allocation7 + $0x770] sm:$0xff] %v2074
    %2331 = vst [vmem:[#allocation7 + $0x778] sm:$0xff] %v2075
    %2332 = vst [vmem:[#allocation7 + $0x780] sm:$0xff] %v2076
    %2333 = vst [vmem:[#allocation7 + $0x788] sm:$0xff] %v2077
    %2334 = vst [vmem:[#allocation7 + $0x790] sm:$0xff] %v2078
    %2335 = vst [vmem:[#allocation7 + $0x798] sm:$0xff] %v2079
    %2336 = vst [vmem:[#allocation7 + $0x7a0] sm:$0xff] %v2080
    %2337 = vst [vmem:[#allocation7 + $0x7a8] sm:$0xff] %v2081
    %2338 = vst [vmem:[#allocation7 + $0x7b0] sm:$0xff] %v2082
    %2339 = vst [vmem:[#allocation7 + $0x7b8] sm:$0xff] %v2083
    %2340 = vst [vmem:[#allocation7 + $0x7c0] sm:$0xff] %v2084
    %2341 = vst [vmem:[#allocation7 + $0x7c8] sm:$0xff] %v2085
    %2342 = vst [vmem:[#allocation7 + $0x7d0] sm:$0xff] %v2086
    %2343 = vst [vmem:[#allocation7 + $0x7d8] sm:$0xff] %v2087
    %2344 = vst [vmem:[#allocation7 + $0x7e0] sm:$0xff] %v2088
    %2345 = vst [vmem:[#allocation7 + $0x7e8] sm:$0xff] %v2089
    %2346 = vst [vmem:[#allocation7 + $0x7f0] sm:$0xff] %v2090
    %2347 = vst [vmem:[#allocation7 + $0x7f8] sm:$0xff] %v2091
    // Predicated region
    $region18: #{inner_product_decoder.1} parent=1 // pred_check
      _
    $region19: #{inner_product_decoder.1} parent=1 // pred_check_branch
      %2349 = sbr.rel (0) target = $region21
    $region20: #{inner_product_decoder.1} parent=1 // pred_region
      %s2351 = ssub.s32 32768, 32768
      %2352 = vsyncadd [#allocation4], %s2351
      %s2353 = sshll.u32 [#allocation7], 4
      %s2354 = int_to_ptr.vmem [resolvable:$true] %s2353
      %2359 = dma.vmem_to_hbm [thread:$0]  %s2354, 32768, %s2, [#allocation4], 512, 512, 32
    $region21: #{inner_product_decoder.1} parent=1 // pred_fallthru
      _
    // Predicated region
    $region22: #{inner_product_decoder.1} parent=1 // pred_check
      _
    $region23: #{inner_product_decoder.1} parent=1 // pred_check_branch
      %2361 = sbr.rel (0) target = $region25
    $region24: #{inner_product_decoder.1} parent=1 // pred_region
      %2362 = dma.done [#allocation4], 32768
    $region25: #{inner_product_decoder.1} parent=1 // pred_fallthru
      _
    %2363 = vsyncpa [#allocation3], 1
    %2364 = vsyncpa [#allocation6], 1
    %2365 = vsyncpa [#allocation4], 1

</llo_original>
